<compile_context>
chip_gen: v5e
topology: v5e:2x2
jax: 0.10.0
libtpu: 0.0.40
codegen_flags: <defaults>
</compile_context>

<pallas_src>
import jax
import jax.numpy as jnp
import numpy as np
from jax import lax
from jax.experimental import pallas as pl
from jax.experimental.pallas import tpu as pltpu

ALPHA = 0.25
GAMMA = 2.0


# ---------------------------------------------------------------------------
# Fused kernel factory: detection head + FocalLoss, tiled over the anchor axis
# ---------------------------------------------------------------------------
def _build_fused_call(B, C, NC, M, A_pad, A_real, ta, emit_activations):
    n_chunks = A_pad // ta
    needs_mask = A_pad != A_real

    def body(x_ref, w_ref, b_ref, anc_ref, ann_ref, head_out_ref,
             closs_ref, rloss_ref, acc_cls_ref, acc_reg_ref, acc_np_ref):
        a_idx = pl.program_id(1)
        n_a = pl.num_programs(1)

        @pl.when(a_idx == 0)
        def _init():
            acc_cls_ref[...] = jnp.zeros((NC, ta), jnp.float32)
            acc_reg_ref[...] = jnp.zeros((1, ta), jnp.float32)
            acc_np_ref[...] = jnp.zeros((1, ta), jnp.float32)

        # ---- detection head: one fused (NC+4, C) @ (C, ta) matmul, anchor axis on lanes ----
        x = x_ref[0]                                                    # (C, ta)
        head = jnp.dot(w_ref[...], x, preferred_element_type=jnp.float32) + b_ref[...]
        # TODO(synk): cast x / w_head to bf16 here for realistic C (>=64); at C=4 the MXU is idle.
        if emit_activations:
            sig_all = jax.nn.sigmoid(head)                              # (NC+4, ta)
            row_iota = lax.broadcasted_iota(jnp.int32, (NC + 4, ta), 0)
            # single packed lane-dense writeback: sigmoid cls rows + raw reg rows
            head_out_ref[0] = jnp.where(row_iota < NC, sig_all, head)
            sig = sig_all[:NC, :]
        else:
            sig = jax.nn.sigmoid(head[:NC, :])                          # (NC, ta), no HBM store
        reg = head[NC:NC + 4, :]                                        # (4, ta)
        cls = jnp.clip(sig, 1e-4, 1.0 - 1e-4)

        # ---- anchors: VMEM-resident (4, A_pad) table, slice the current chunk in-kernel ----
        a_start = pl.multiple_of(a_idx * ta, 128)
        anc = anc_ref[:, pl.ds(a_start, ta)]                            # (4, ta) [y1,x1,y2,x2]
        a_y1, a_x1 = anc[0:1, :], anc[1:2, :]
        a_y2, a_x2 = anc[2:3, :], anc[3:4, :]
        aw = a_x2 - a_x1
        ah = a_y2 - a_y1
        acx = a_x1 + 0.5 * aw
        acy = a_y1 + 0.5 * ah

        ann = ann_ref[0]                                                # (M, 5)
        g_x1, g_y1 = ann[:, 0:1], ann[:, 1:2]
        g_x2, g_y2 = ann[:, 2:3], ann[:, 3:4]
        g_cls = ann[:, 4:5]
        valid = g_cls != -1.0                                           # (M, 1)

        # ---- IoU between every anchor in this chunk and every (valid) annotation: (M, ta) ----
        area = (g_x2 - g_x1) * (g_y2 - g_y1)
        iw = jnp.maximum(jnp.minimum(a_x2, g_x2) - jnp.maximum(a_x1, g_x1), 0.0)
        ih = jnp.maximum(jnp.minimum(a_y2, g_y2) - jnp.maximum(a_y1, g_y1), 0.0)
        ua = jnp.maximum(aw * ah + area - iw * ih, 1e-8)
        # exact divide (not approx reciprocal): IoU feeds the 0.4/0.5 thresholds + argmax.
        iou = jnp.where(valid, (iw * ih) / ua, -1.0)                    # padded boxes never win

        iou_max = jnp.max(iou, axis=0, keepdims=True)                   # (1, ta)
        m_iota = lax.broadcasted_iota(jnp.int32, (M, 1), 0)
        first_idx = jnp.min(jnp.where(iou == iou_max, m_iota, M), axis=0, keepdims=True)
        onehot_m = (m_iota == first_idx).astype(jnp.float32)            # first-index argmax

        # TODO(synk): these 5 gathers could be one (8,M)@(M,ta) MXU matmul; kept exact
        # (VPU mul + sublane reduce) because as_cls feeds an exact float equality below.
        def gather(v):                                                  # (M, 1) -> (1, ta)
            return jnp.sum(onehot_m * v, axis=0, keepdims=True)

        as_x1, as_y1 = gather(g_x1), gather(g_y1)
        as_x2, as_y2 = gather(g_x2), gather(g_y2)
        as_cls = gather(g_cls)

        pos = iou_max >= 0.5                                            # (1, ta)
        neg = iou_max < 0.4
        posf = pos.astype(jnp.float32)
        if needs_mask:
            lane_ids = a_start + lax.broadcasted_iota(jnp.int32, (1, ta), 1)
            in_range = (lane_ids < A_real).astype(jnp.float32)          # tail-padding mask
            posf = posf * in_range

        # ---- classification focal loss ----
        nc_iota = lax.broadcasted_iota(jnp.int32, (NC, 1), 0).astype(jnp.float32)
        onehot_cls = (nc_iota == as_cls).astype(jnp.float32)            # (NC, ta)
        targets = jnp.where(pos, onehot_cls, jnp.where(neg, 0.0, -1.0))

        is_one = targets == 1.0
        alpha_factor = jnp.where(is_one, ALPHA, 1.0 - ALPHA)
        focal_weight = jnp.where(is_one, 1.0 - cls, cls)
        focal_weight = alpha_factor * (focal_weight * focal_weight)     # gamma == 2 (exact pow)
        # single-log BCE: targets are exactly {1, 0, -1}; -1 entries are masked right after
        bce = -jnp.log(jnp.where(is_one, cls, 1.0 - cls))
        cls_loss = jnp.where(targets != -1.0, focal_weight * bce, 0.0)
        if needs_mask:
            cls_loss = cls_loss * in_range

        # ---- regression smooth-L1 loss (positives only) ----
        gw_raw = as_x2 - as_x1
        gh_raw = as_y2 - as_y1
        gcx = as_x1 + 0.5 * gw_raw
        gcy = as_y1 + 0.5 * gh_raw
        gw = jnp.maximum(gw_raw, 1.0)
        gh = jnp.maximum(gh_raw, 1.0)

        t_dy = ((gcy - acy) / ah) / 0.1
        t_dx = ((gcx - acx) / aw) / 0.1
        t_dh = jnp.log(gh / ah) / 0.2
        t_dw = jnp.log(gw / aw) / 0.2

        def smooth_l1(t, r):
            d = jnp.abs(t - r)
            return jnp.where(d <= 1.0 / 9.0, 0.5 * 9.0 * d * d, d - 0.5 / 9.0)

        reg_loss = posf * (smooth_l1(t_dy, reg[0:1, :]) + smooth_l1(t_dx, reg[1:2, :])
                           + smooth_l1(t_dh, reg[2:3, :]) + smooth_l1(t_dw, reg[3:4, :]))

        # ---- vector accumulation: plain element-wise adds (no per-chunk XLU reduces) ----
        acc_cls_ref[...] += cls_loss
        acc_reg_ref[...] += reg_loss
        acc_np_ref[...] += posf

        @pl.when(a_idx == n_a - 1)
        def _finalize():
            num_pos = jnp.sum(acc_np_ref[...], keepdims=True)            # (1, 1)
            cls_sum = jnp.sum(acc_cls_ref[...], keepdims=True)
            reg_sum = jnp.sum(acc_reg_ref[...], keepdims=True)
            cls_val = cls_sum / jnp.maximum(num_pos, 1.0)
            reg_val = reg_sum / jnp.maximum(4.0 * num_pos, 1.0)
            closs_ref[...] = jnp.broadcast_to(cls_val[None], (1, 1, 128))
            rloss_ref[...] = jnp.broadcast_to(reg_val[None], (1, 1, 128))

    loss_shape = jax.ShapeDtypeStruct((B, 1, 128), jnp.float32)
    loss_spec = pl.BlockSpec((1, 1, 128), lambda b, a: (b, 0, 0))

    if emit_activations:
        kernel = body
        out_shape = (jax.ShapeDtypeStruct((B, NC + 4, A_pad), jnp.float32),
                     loss_shape, loss_shape)
        out_specs = (pl.BlockSpec((1, NC + 4, ta), lambda b, a: (b, 0, a)),
                     loss_spec, loss_spec)
    else:
        def kernel(x_ref, w_ref, b_ref, anc_ref, ann_ref,
                   closs_ref, rloss_ref, acc_cls_ref, acc_reg_ref, acc_np_ref):
            body(x_ref, w_ref, b_ref, anc_ref, ann_ref, None,
                 closs_ref, rloss_ref, acc_cls_ref, acc_reg_ref, acc_np_ref)
        out_shape = (loss_shape, loss_shape)
        out_specs = (loss_spec, loss_spec)

    return pl.pallas_call(
        kernel,
        out_shape=out_shape,
        grid=(B, n_chunks),
        in_specs=[
            pl.BlockSpec((1, C, ta), lambda b, a: (b, 0, a)),
            pl.BlockSpec((NC + 4, C), lambda b, a: (0, 0)),
            pl.BlockSpec((NC + 4, 1), lambda b, a: (0, 0)),
            pl.BlockSpec((4, A_pad), lambda b, a: (0, 0)),    # resident anchor table
            pl.BlockSpec((1, M, 5), lambda b, a: (b, 0, 0)),
        ],
        out_specs=out_specs,
        scratch_shapes=[
            pltpu.VMEM((NC, ta), jnp.float32),   # vector cls-loss accumulator
            pltpu.VMEM((1, ta), jnp.float32),    # vector reg-loss accumulator
            pltpu.VMEM((1, ta), jnp.float32),    # vector num_pos accumulator
        ],
        compiler_params=pltpu.CompilerParams(
            dimension_semantics=("parallel", "arbitrary"),
            vmem_limit_bytes=32 * 1024 * 1024,
        ),
    )


def _pick_anchor_tile(a_pad, max_tile=2048):
    """Largest multiple-of-128 divisor of the (padded) anchor count, capped at max_tile."""
    # TODO(synk): on v7x (64 MiB VMEM) derive the cap from NC and the live-intermediate count.
    cap = min(max_tile, a_pad)
    cap -= cap % 128
    cap = max(cap, 128)
    t = cap
    while a_pad % t:
        t -= 128
    return t


# ---------------------------------------------------------------------------
# ModelWithLoss.forward equivalent
# ---------------------------------------------------------------------------
def model_with_loss_forward(imgs, annotations, params, anchor_tile=None,
                            return_activations=False):
    # imgs: (B, C, H, W) -- NCHW, as in PyTorch
    B, C, H, W = imgs.shape
    A = H * W
    A_pad = max(128, ((A + 127) // 128) * 128)
    M = annotations.shape[1]
    w_head = params["w_head_t"]                     # (NC+4, C)
    b_head = params["b_head_t"]                     # (NC+4, 1)
    NC = w_head.shape[0] - 4
    anchors = params["anchors"]                     # (1, A, 4)   (model-style output)
    anchors_t = params["anchors_t"]                 # (4, A)      (lane-major for the kernel)

    # NCHW -> (B, C, A): pure reshape, anchor axis already on the fast (lane) axis.
    x = imgs.reshape(B, C, A)
    if A_pad != A:
        x = jnp.pad(x, ((0, 0), (0, 0), (0, A_pad - A)))
        # replicate last anchor into padding (finite boxes, never counted: masked in-kernel)
        anchors_t = jnp.pad(anchors_t, ((0, 0), (0, A_pad - A)), mode="edge")

    ta = _pick_anchor_tile(A_pad) if anchor_tile is None else anchor_tile
    assert A_pad % ta == 0 and ta % 128 == 0

    call = _build_fused_call(B, C, NC, M, A_pad, A, ta, return_activations)
    if return_activations:
        head_t, closs, rloss = call(x, w_head, b_head, anchors_t, annotations)
    else:
        closs, rloss = call(x, w_head, b_head, anchors_t, annotations)

    cls_loss = jnp.mean(closs[:, 0, 0])
    reg_loss = jnp.mean(rloss[:, 0, 0])
    if not return_activations:
        # hot path: matches the PyTorch forward (only the two losses, no activation HBM traffic)
        return cls_loss, reg_loss

    # validation-only extras kept in the kernel's lane-dense layout (no wrapper transposes).
    classification = head_t[:, :NC, :A]             # (B, NC, A), sigmoid already applied
    regression = head_t[:, NC:NC + 4, :A]           # (B, 4, A)
    return cls_loss, reg_loss, classification, regression, anchors


# ---------------------------------------------------------------------------
# deterministic parameter / data construction
# ---------------------------------------------------------------------------
def make_anchors(h, w, size=4.0, stride=1.0):
    ys = (jnp.arange(h, dtype=jnp.float32) + 0.5) * stride
    xs = (jnp.arange(w, dtype=jnp.float32) + 0.5) * stride
    cy, cx = jnp.meshgrid(ys, xs, indexing="ij")
    half = size / 2.0
    anchors = jnp.stack([cy - half, cx - half, cy + half, cx + half], axis=-1)  # (y1,x1,y2,x2)
    return anchors.reshape(1, h * w, 4)


def init_params(key, c, nc, h, w):
    k1, k2 = jax.random.split(key)
    w_cls = jax.random.normal(k1, (c, nc), jnp.float32) * 0.1
    b_cls = jnp.full((1, nc), -4.595, jnp.float32)              # prior prob ~0.01
    w_reg = jax.random.normal(k2, (c, 4), jnp.float32) * 0.1
    b_reg = jnp.zeros((1, 4), jnp.float32)
    anchors = make_anchors(h, w)
    return dict(
        # fused head: one (NC+4, C) matmul instead of two skinny ones
        w_head_t=jnp.concatenate([w_cls, w_reg], axis=1).T,     # (NC+4, C)
        b_head_t=jnp.concatenate([b_cls, b_reg], axis=1).T,     # (NC+4, 1)
        anchors=anchors,                                        # (1, A, 4)
        anchors_t=jnp.transpose(anchors[0], (1, 0)),            # (4, A)
    )


def make_annotations(key, b, m, nc, img_size):
    k1, k2, k3, k4, k5 = jax.random.split(key, 5)
    cx = jax.random.uniform(k1, (b, m), jnp.float32, 3.0, img_size - 3.0)
    cy = jax.random.uniform(k2, (b, m), jnp.float32, 3.0, img_size - 3.0)
    bw = jax.random.uniform(k3, (b, m), jnp.float32, 2.0, 6.0)
    bh = jax.random.uniform(k4, (b, m), jnp.float32, 2.0, 6.0)
    cls_id = jax.random.randint(k5, (b, m), 0, nc).astype(jnp.float32)
    ann = jnp.stack([cx - bw / 2, cy - bh / 2, cx + bw / 2, cy + bh / 2, cls_id], axis=-1)
    valid = (jnp.arange(m) < 5)[None, :, None]                  # first 5 boxes valid, rest padded
    return jnp.where(valid, ann, -1.0)


# ---------------------------------------------------------------------------
# pure-numpy reference of FocalLoss (faithful port of the PyTorch code)
# ---------------------------------------------------------------------------
def focal_loss_numpy_ref(cls_all, reg_all, anchors, ann_all):
    anchor = anchors[0]
    aw = anchor[:, 3] - anchor[:, 1]
    ah = anchor[:, 2] - anchor[:, 0]
    acx = anchor[:, 1] + 0.5 * aw
    acy = anchor[:, 0] + 0.5 * ah
    cls_losses, reg_losses = [], []
    for j in range(cls_all.shape[0]):
        classification = np.clip(cls_all[j], 1e-4, 1.0 - 1e-4)
        regression = reg_all[j]
        bbox = ann_all[j]
        bbox = bbox[bbox[:, 4] != -1]
        area = (bbox[:, 2] - bbox[:, 0]) * (bbox[:, 3] - bbox[:, 1])
        iw = np.minimum(anchor[:, 3][:, None], bbox[None, :, 2]) - np.maximum(anchor[:, 1][:, None], bbox[None, :, 0])
        ih = np.minimum(anchor[:, 2][:, None], bbox[None, :, 3]) - np.maximum(anchor[:, 0][:, None], bbox[None, :, 1])
        iw = np.clip(iw, 0, None)
        ih = np.clip(ih, 0, None)
        ua = np.clip((aw * ah)[:, None] + area[None, :] - iw * ih, 1e-8, None)
        iou = iw * ih / ua
        iou_max, iou_arg = iou.max(axis=1), iou.argmax(axis=1)
        targets = -np.ones_like(classification)
        targets[iou_max < 0.4, :] = 0.0
        pos = iou_max >= 0.5
        num_pos = pos.sum()
        assigned = bbox[iou_arg]
        targets[pos, :] = 0.0
        targets[pos, assigned[pos, 4].astype(np.int32)] = 1.0
        af = np.where(targets == 1.0, ALPHA, 1.0 - ALPHA)
        fw = np.where(targets == 1.0, 1.0 - classification, classification)
        fw = af * fw ** GAMMA
        bce = -(targets * np.log(classification) + (1.0 - targets) * np.log(1.0 - classification))
        cl = np.where(targets != -1.0, fw * bce, 0.0)
        cls_losses.append(cl.sum() / max(float(num_pos), 1.0))
        if num_pos > 0:
            ap = assigned[pos]
            gw = ap[:, 2] - ap[:, 0]
            gh = ap[:, 3] - ap[:, 1]
            gcx = ap[:, 0] + 0.5 * gw
            gcy = ap[:, 1] + 0.5 * gh
            gw = np.clip(gw, 1, None)
            gh = np.clip(gh, 1, None)
            t = np.stack([(gcy - acy[pos]) / ah[pos], (gcx - acx[pos]) / aw[pos],
                          np.log(gh / ah[pos]), np.log(gw / aw[pos])], axis=1)
            t = t / np.array([[0.1, 0.1, 0.2, 0.2]], np.float32)
            d = np.abs(t - regression[pos])
            rl = np.where(d <= 1.0 / 9.0, 0.5 * 9.0 * d * d, d - 0.5 / 9.0)
            reg_losses.append(rl.mean())
        else:
            reg_losses.append(0.0)
    return float(np.mean(cls_losses)), float(np.mean(reg_losses))


if __name__ == "__main__":
    B, C, H, W = 2, 4, 16, 16
    NC, M = 8, 8
    key = jax.random.PRNGKey(0)
    k_img, k_par, k_ann, k_img2, k_ann2 = jax.random.split(key, 5)

    imgs = jax.random.normal(k_img, (B, C, H, W), jnp.float32)
    params = init_params(k_par, C, NC, H, W)
    annotations = make_annotations(k_ann, B, M, NC, img_size=float(H))

    # Hot path (matches the PyTorch ModelWithLoss.forward): losses only, no activation stores.
    # anchor_tile=128 -> grid (B=2, 2 chunks): exercises the cross-chunk accumulate/finalize path.
    cls_loss, reg_loss = model_with_loss_forward(imgs, annotations, params, anchor_tile=128)
    jax.block_until_ready((cls_loss, reg_loss))

    # Validation mode: also emit the packed head activations and compare with the numpy reference.
    cls_v, reg_v, classification, regression, anchors = model_with_loss_forward(
        imgs, annotations, params, anchor_tile=128, return_activations=True)
    jax.block_until_ready((cls_v, reg_v, classification, regression))

    ref_cls, ref_reg = focal_loss_numpy_ref(
        np.transpose(np.asarray(classification, np.float32), (0, 2, 1)),   # (B, A, NC)
        np.transpose(np.asarray(regression, np.float32), (0, 2, 1)),       # (B, A, 4)
        np.asarray(anchors, np.float32), np.asarray(annotations, np.float32))
    np.testing.assert_allclose(float(cls_v), ref_cls, rtol=2e-3, atol=2e-3)
    np.testing.assert_allclose(float(reg_v), ref_reg, rtol=2e-3, atol=2e-3)
    np.testing.assert_allclose(float(cls_loss), float(cls_v), rtol=1e-5, atol=1e-6)
    np.testing.assert_allclose(float(reg_loss), float(reg_v), rtol=1e-5, atol=1e-6)

    # Non-128-aligned feature map: exercises the anchor-axis padding + lane-mask path.
    H2 = W2 = 12                                                # A = 144 -> padded to 256
    imgs2 = jax.random.normal(k_img2, (B, C, H2, W2), jnp.float32)
    params2 = init_params(k_par, C, NC, H2, W2)
    annotations2 = make_annotations(k_ann2, B, M, NC, img_size=float(H2))
    cls2, reg2, classification2, regression2, anchors2 = model_with_loss_forward(
        imgs2, annotations2, params2, anchor_tile=128, return_activations=True)
    jax.block_until_ready((cls2, reg2))
    ref_cls2, ref_reg2 = focal_loss_numpy_ref(
        np.transpose(np.asarray(classification2, np.float32), (0, 2, 1)),
        np.transpose(np.asarray(regression2, np.float32), (0, 2, 1)),
        np.asarray(anchors2, np.float32), np.asarray(annotations2, np.float32))
    np.testing.assert_allclose(float(cls2), ref_cls2, rtol=2e-3, atol=2e-3)
    np.testing.assert_allclose(float(reg2), ref_reg2, rtol=2e-3, atol=2e-3)

    print("KERNEL_OK")
</pallas_src>

<mosaic_0001>
module attributes {stable_mosaic.version = 11 : i64} {
  func.func @kernel(%arg0: i32, %arg1: i32, %arg2: memref<1x4x128xf32, #tpu.memory_space<vmem>>, %arg3: memref<12x4xf32, #tpu.memory_space<vmem>>, %arg4: memref<12x1xf32, #tpu.memory_space<vmem>>, %arg5: memref<4x256xf32, #tpu.memory_space<vmem>>, %arg6: memref<1x8x5xf32, #tpu.memory_space<vmem>>, %arg7: memref<1x1x128xf32, #tpu.memory_space<vmem>>, %arg8: memref<1x1x128xf32, #tpu.memory_space<vmem>>, %arg9: memref<8x128xf32, #tpu.memory_space<vmem>>, %arg10: memref<1x128xf32, #tpu.memory_space<vmem>>, %arg11: memref<1x128xf32, #tpu.memory_space<vmem>>) attributes {dimension_semantics = [#tpu.dimension_semantics<parallel>, #tpu.dimension_semantics<arbitrary>], iteration_bounds = array<i64: 2, 2>, scalar_prefetch = 0 : i64, scratch_operands = 3 : i64, tpu.core_type = #tpu.core_type<tc>, window_params = [{transform_indices = @transform_0, window_bounds = array<i64: 1, 4, 128>}, {pipeline_mode = #tpu.pipeline_mode<synchronous>, transform_indices = @transform_1, window_bounds = array<i64: 12, 4>}, {pipeline_mode = #tpu.pipeline_mode<synchronous>, transform_indices = @transform_2, window_bounds = array<i64: 12, 1>}, {pipeline_mode = #tpu.pipeline_mode<synchronous>, transform_indices = @transform_3, window_bounds = array<i64: 4, 256>}, {transform_indices = @transform_4, window_bounds = array<i64: 1, 8, 5>}, {transform_indices = @transform_5, window_bounds = array<i64: 1, 1, 128>}, {transform_indices = @transform_6, window_bounds = array<i64: 1, 1, 128>}]} {
    %c0_i32 = arith.constant 0 : i32
    %0 = arith.cmpi eq, %arg1, %c0_i32 : i32
    %1 = arith.extui %0 : i1 to i32
    %c0_i32_0 = arith.constant 0 : i32
    %2 = arith.cmpi ne, %1, %c0_i32_0 : i32
    scf.if %2 {
      %cst_73 = arith.constant 0.000000e+00 : f32
      %247 = vector.broadcast %cst_73 : f32 to vector<8x128xf32>
      %c0_74 = arith.constant 0 : index
      %c0_75 = arith.constant 0 : index
      %248 = vector.load %arg9[%c0_74, %c0_75] : memref<8x128xf32, #tpu.memory_space<vmem>>, vector<8x128xf32>
      tpu.vector_store %arg9[%c0_74, %c0_75], %247 {strides = array<i32>} : memref<8x128xf32, #tpu.memory_space<vmem>>, vector<8x128xf32>,
      %cst_76 = arith.constant 0.000000e+00 : f32
      %249 = vector.broadcast %cst_76 : f32 to vector<1x128xf32>
      %c0_77 = arith.constant 0 : index
      %c0_78 = arith.constant 0 : index
      %250 = vector.load %arg10[%c0_77, %c0_78] : memref<1x128xf32, #tpu.memory_space<vmem>>, vector<1x128xf32>
      tpu.vector_store %arg10[%c0_77, %c0_78], %249 {strides = array<i32>} : memref<1x128xf32, #tpu.memory_space<vmem>>, vector<1x128xf32>,
      %cst_79 = arith.constant 0.000000e+00 : f32
      %251 = vector.broadcast %cst_79 : f32 to vector<1x128xf32>
      %c0_80 = arith.constant 0 : index
      %c0_81 = arith.constant 0 : index
      %252 = vector.load %arg11[%c0_80, %c0_81] : memref<1x128xf32, #tpu.memory_space<vmem>>, vector<1x128xf32>
      tpu.vector_store %arg11[%c0_80, %c0_81], %251 {strides = array<i32>} : memref<1x128xf32, #tpu.memory_space<vmem>>, vector<1x128xf32>,
    } else {
    }
    %c0 = arith.constant 0 : index
    %c0_1 = arith.constant 0 : index
    %c0_2 = arith.constant 0 : index
    %3 = vector.load %arg2[%c0, %c0_1, %c0_2] : memref<1x4x128xf32, #tpu.memory_space<vmem>>, vector<1x4x128xf32>
    %4 = vector.shape_cast %3 : vector<1x4x128xf32> to vector<4x128xf32>
    %c0_3 = arith.constant 0 : index
    %c0_4 = arith.constant 0 : index
    %5 = vector.load %arg3[%c0_3, %c0_4] : memref<12x4xf32, #tpu.memory_space<vmem>>, vector<12x4xf32>
    %cst = arith.constant dense<0.000000e+00> : vector<12x128xf32>
    %6 = tpu.matmul %5, %4, %cst {dimension_numbers = #tpu.dot_dimension_numbers<[1], [0], [0], [1], [0, 0, 1, 1], [], []>} : vector<12x4xf32>, vector<4x128xf32>, vector<12x128xf32> -> vector<12x128xf32>
    %c0_5 = arith.constant 0 : index
    %c0_6 = arith.constant 0 : index
    %7 = vector.load %arg4[%c0_5, %c0_6] : memref<12x1xf32, #tpu.memory_space<vmem>>, vector<12x1xf32>
    %8 = vector.broadcast %7 : vector<12x1xf32> to vector<12x128xf32>
    %9 = arith.addf %6, %8 : vector<12x128xf32>
    %10 = vector.extract_strided_slice %9 {offsets = [0, 0], sizes = [8, 128], strides = [1, 1]} : vector<12x128xf32> to vector<8x128xf32>
    %11 = arith.negf %10 : vector<8x128xf32>
    %12 = math.exp %11 : vector<8x128xf32>
    %cst_7 = arith.constant 1.000000e+00 : f32
    %13 = vector.broadcast %cst_7 : f32 to vector<8x128xf32>
    %14 = arith.addf %13, %12 : vector<8x128xf32>
    %15 = arith.divf %13, %14 : vector<8x128xf32>
    %16 = vector.extract_strided_slice %9 {offsets = [8, 0], sizes = [4, 128], strides = [1, 1]} : vector<12x128xf32> to vector<4x128xf32>
    %cst_8 = arith.constant 9.99999974E-5 : f32
    %cst_9 = arith.constant 0.999899983 : f32
    %17 = vector.broadcast %cst_8 : f32 to vector<8x128xf32>
    %18 = arith.maximumf %17, %15 : vector<8x128xf32>
    %19 = vector.broadcast %cst_9 : f32 to vector<8x128xf32>
    %20 = arith.minimumf %19, %18 : vector<8x128xf32>
    %c128_i32 = arith.constant 128 : i32
    %21 = arith.muli %arg1, %c128_i32 : i32
    %22 = tpu.assume_multiple %21, 128 : i32
    %c0_10 = arith.constant 0 : index
    %23 = arith.index_cast %22 : i32 to index
    %24 = vector.load %arg5[%c0_10, %23] : memref<4x256xf32, #tpu.memory_space<vmem>>, vector<4x128xf32>
    %25 = vector.extract_strided_slice %24 {offsets = [0, 0], sizes = [1, 128], strides = [1, 1]} : vector<4x128xf32> to vector<1x128xf32>
    %26 = vector.extract_strided_slice %24 {offsets = [1, 0], sizes = [1, 128], strides = [1, 1]} : vector<4x128xf32> to vector<1x128xf32>
    %27 = vector.extract_strided_slice %24 {offsets = [2, 0], sizes = [1, 128], strides = [1, 1]} : vector<4x128xf32> to vector<1x128xf32>
    %28 = vector.extract_strided_slice %24 {offsets = [3, 0], sizes = [1, 128], strides = [1, 1]} : vector<4x128xf32> to vector<1x128xf32>
    %29 = arith.subf %28, %26 : vector<1x128xf32>
    %30 = arith.subf %27, %25 : vector<1x128xf32>
    %cst_11 = arith.constant 5.000000e-01 : f32
    %31 = vector.broadcast %cst_11 : f32 to vector<1x128xf32>
    %32 = arith.mulf %31, %29 : vector<1x128xf32>
    %33 = arith.addf %26, %32 : vector<1x128xf32>
    %cst_12 = arith.constant 5.000000e-01 : f32
    %34 = vector.broadcast %cst_12 : f32 to vector<1x128xf32>
    %35 = arith.mulf %34, %30 : vector<1x128xf32>
    %36 = arith.addf %25, %35 : vector<1x128xf32>
    %c0_13 = arith.constant 0 : index
    %c0_14 = arith.constant 0 : index
    %c0_15 = arith.constant 0 : index
    %37 = vector.load %arg6[%c0_13, %c0_14, %c0_15] : memref<1x8x5xf32, #tpu.memory_space<vmem>>, vector<1x8x5xf32>
    %38 = vector.shape_cast %37 : vector<1x8x5xf32> to vector<8x5xf32>
    %39 = vector.extract_strided_slice %38 {offsets = [0, 0], sizes = [8, 1], strides = [1, 1]} : vector<8x5xf32> to vector<8x1xf32>
    %40 = vector.extract_strided_slice %38 {offsets = [0, 1], sizes = [8, 1], strides = [1, 1]} : vector<8x5xf32> to vector<8x1xf32>
    %41 = vector.extract_strided_slice %38 {offsets = [0, 2], sizes = [8, 1], strides = [1, 1]} : vector<8x5xf32> to vector<8x1xf32>
    %42 = vector.extract_strided_slice %38 {offsets = [0, 3], sizes = [8, 1], strides = [1, 1]} : vector<8x5xf32> to vector<8x1xf32>
    %43 = vector.extract_strided_slice %38 {offsets = [0, 4], sizes = [8, 1], strides = [1, 1]} : vector<8x5xf32> to vector<8x1xf32>
    %cst_16 = arith.constant -1.000000e+00 : f32
    %44 = vector.broadcast %cst_16 : f32 to vector<8x1xf32>
    %45 = arith.cmpf one, %43, %44 : vector<8x1xf32>
    %46 = arith.subf %41, %39 : vector<8x1xf32>
    %47 = arith.subf %42, %40 : vector<8x1xf32>
    %48 = arith.mulf %46, %47 : vector<8x1xf32>
    %49 = vector.broadcast %28 : vector<1x128xf32> to vector<8x128xf32>
    %50 = vector.broadcast %41 : vector<8x1xf32> to vector<8x128xf32>
    %51 = arith.minimumf %49, %50 : vector<8x128xf32>
    %52 = vector.broadcast %26 : vector<1x128xf32> to vector<8x128xf32>
    %53 = vector.broadcast %39 : vector<8x1xf32> to vector<8x128xf32>
    %54 = arith.maximumf %52, %53 : vector<8x128xf32>
    %55 = arith.subf %51, %54 : vector<8x128xf32>
    %cst_17 = arith.constant 0.000000e+00 : f32
    %56 = vector.broadcast %cst_17 : f32 to vector<8x128xf32>
    %57 = arith.maximumf %55, %56 : vector<8x128xf32>
    %58 = vector.broadcast %27 : vector<1x128xf32> to vector<8x128xf32>
    %59 = vector.broadcast %42 : vector<8x1xf32> to vector<8x128xf32>
    %60 = arith.minimumf %58, %59 : vector<8x128xf32>
    %61 = vector.broadcast %25 : vector<1x128xf32> to vector<8x128xf32>
    %62 = vector.broadcast %40 : vector<8x1xf32> to vector<8x128xf32>
    %63 = arith.maximumf %61, %62 : vector<8x128xf32>
    %64 = arith.subf %60, %63 : vector<8x128xf32>
    %cst_18 = arith.constant 0.000000e+00 : f32
    %65 = vector.broadcast %cst_18 : f32 to vector<8x128xf32>
    %66 = arith.maximumf %64, %65 : vector<8x128xf32>
    %67 = arith.mulf %29, %30 : vector<1x128xf32>
    %68 = vector.broadcast %67 : vector<1x128xf32> to vector<8x128xf32>
    %69 = vector.broadcast %48 : vector<8x1xf32> to vector<8x128xf32>
    %70 = arith.addf %68, %69 : vector<8x128xf32>
    %71 = arith.mulf %57, %66 : vector<8x128xf32>
    %72 = arith.subf %70, %71 : vector<8x128xf32>
    %cst_19 = arith.constant 9.99999993E-9 : f32
    %73 = vector.broadcast %cst_19 : f32 to vector<8x128xf32>
    %74 = arith.maximumf %72, %73 : vector<8x128xf32>
    %75 = arith.mulf %57, %66 : vector<8x128xf32>
    %76 = arith.divf %75, %74 : vector<8x128xf32>
    %cst_20 = arith.constant -1.000000e+00 : f32
    %77 = vector.shape_cast %45 : vector<8x1xi1> to vector<8x1xi1>
    %78 = vector.broadcast %77 : vector<8x1xi1> to vector<8x128xi1>
    %79 = vector.broadcast %cst_20 : f32 to vector<8x128xf32>
    %80 = arith.select %78, %76, %79 : vector<8x128xi1>, vector<8x128xf32>
    %cst_21 = arith.constant dense<0xFF800000> : vector<128xf32>
    %81 = vector.multi_reduction <maximumf>, %80, %cst_21 [0] : vector<8x128xf32> to vector<128xf32>
    %82 = vector.shape_cast %81 : vector<128xf32> to vector<1x128xf32>
    %83 = tpu.iota {dimensions = array<i32: 0>} : vector<8x1xi32>
    %84 = vector.broadcast %82 : vector<1x128xf32> to vector<8x128xf32>
    %85 = arith.cmpf oeq, %80, %84 : vector<8x128xf32>
    %c8_i32 = arith.constant 8 : i32
    %86 = vector.shape_cast %83 : vector<8x1xi32> to vector<8x1xi32>
    %87 = vector.broadcast %86 : vector<8x1xi32> to vector<8x128xi32>
    %88 = vector.broadcast %c8_i32 : i32 to vector<8x128xi32>
    %89 = arith.select %85, %87, %88 : vector<8x128xi1>, vector<8x128xi32>
    %cst_22 = arith.constant dense<2147483647> : vector<128xi32>
    %90 = vector.multi_reduction <minsi>, %89, %cst_22 [0] : vector<8x128xi32> to vector<128xi32>
    %91 = vector.shape_cast %90 : vector<128xi32> to vector<1x128xi32>
    %92 = vector.broadcast %83 : vector<8x1xi32> to vector<8x128xi32>
    %93 = vector.broadcast %91 : vector<1x128xi32> to vector<8x128xi32>
    %94 = arith.cmpi eq, %92, %93 : vector<8x128xi32>
    %95 = arith.extui %94 : vector<8x128xi1> to vector<8x128xi32>
    %96 = arith.sitofp %95 : vector<8x128xi32> to vector<8x128xf32>
    %97 = vector.broadcast %39 : vector<8x1xf32> to vector<8x128xf32>
    %98 = arith.mulf %96, %97 : vector<8x128xf32>
    %cst_23 = arith.constant dense<0.000000e+00> : vector<128xf32>
    %99 = vector.multi_reduction <add>, %98, %cst_23 [0] : vector<8x128xf32> to vector<128xf32>
    %100 = vector.shape_cast %99 : vector<128xf32> to vector<1x128xf32>
    %101 = vector.broadcast %40 : vector<8x1xf32> to vector<8x128xf32>
    %102 = arith.mulf %96, %101 : vector<8x128xf32>
    %cst_24 = arith.constant dense<0.000000e+00> : vector<128xf32>
    %103 = vector.multi_reduction <add>, %102, %cst_24 [0] : vector<8x128xf32> to vector<128xf32>
    %104 = vector.shape_cast %103 : vector<128xf32> to vector<1x128xf32>
    %105 = vector.broadcast %41 : vector<8x1xf32> to vector<8x128xf32>
    %106 = arith.mulf %96, %105 : vector<8x128xf32>
    %cst_25 = arith.constant dense<0.000000e+00> : vector<128xf32>
    %107 = vector.multi_reduction <add>, %106, %cst_25 [0] : vector<8x128xf32> to vector<128xf32>
    %108 = vector.shape_cast %107 : vector<128xf32> to vector<1x128xf32>
    %109 = vector.broadcast %42 : vector<8x1xf32> to vector<8x128xf32>
    %110 = arith.mulf %96, %109 : vector<8x128xf32>
    %cst_26 = arith.constant dense<0.000000e+00> : vector<128xf32>
    %111 = vector.multi_reduction <add>, %110, %cst_26 [0] : vector<8x128xf32> to vector<128xf32>
    %112 = vector.shape_cast %111 : vector<128xf32> to vector<1x128xf32>
    %113 = vector.broadcast %43 : vector<8x1xf32> to vector<8x128xf32>
    %114 = arith.mulf %96, %113 : vector<8x128xf32>
    %cst_27 = arith.constant dense<0.000000e+00> : vector<128xf32>
    %115 = vector.multi_reduction <add>, %114, %cst_27 [0] : vector<8x128xf32> to vector<128xf32>
    %116 = vector.shape_cast %115 : vector<128xf32> to vector<1x128xf32>
    %cst_28 = arith.constant 5.000000e-01 : f32
    %117 = vector.broadcast %cst_28 : f32 to vector<1x128xf32>
    %118 = arith.cmpf oge, %82, %117 : vector<1x128xf32>
    %cst_29 = arith.constant 4.000000e-01 : f32
    %119 = vector.broadcast %cst_29 : f32 to vector<1x128xf32>
    %120 = arith.cmpf olt, %82, %119 : vector<1x128xf32>
    %121 = arith.extui %118 : vector<1x128xi1> to vector<1x128xi32>
    %122 = arith.sitofp %121 : vector<1x128xi32> to vector<1x128xf32>
    %123 = tpu.iota {dimensions = array<i32: 0>} : vector<8x1xi32>
    %124 = arith.sitofp %123 : vector<8x1xi32> to vector<8x1xf32>
    %125 = vector.broadcast %124 : vector<8x1xf32> to vector<8x128xf32>
    %126 = vector.broadcast %116 : vector<1x128xf32> to vector<8x128xf32>
    %127 = arith.cmpf oeq, %125, %126 : vector<8x128xf32>
    %128 = arith.extui %127 : vector<8x128xi1> to vector<8x128xi32>
    %129 = arith.sitofp %128 : vector<8x128xi32> to vector<8x128xf32>
    %cst_30 = arith.constant 0.000000e+00 : f32
    %cst_31 = arith.constant -1.000000e+00 : f32
    %130 = vector.broadcast %cst_30 : f32 to vector<1x128xf32>
    %131 = vector.broadcast %cst_31 : f32 to vector<1x128xf32>
    %132 = arith.select %120, %130, %131 : vector<1x128xi1>, vector<1x128xf32>
    %133 = vector.shape_cast %118 : vector<1x128xi1> to vector<1x128xi1>
    %134 = vector.broadcast %133 : vector<1x128xi1> to vector<8x128xi1>
    %135 = vector.shape_cast %132 : vector<1x128xf32> to vector<1x128xf32>
    %136 = vector.broadcast %135 : vector<1x128xf32> to vector<8x128xf32>
    %137 = arith.select %134, %129, %136 : vector<8x128xi1>, vector<8x128xf32>
    %cst_32 = arith.constant 1.000000e+00 : f32
    %138 = vector.broadcast %cst_32 : f32 to vector<8x128xf32>
    %139 = arith.cmpf oeq, %137, %138 : vector<8x128xf32>
    %cst_33 = arith.constant 2.500000e-01 : f32
    %cst_34 = arith.constant 7.500000e-01 : f32
    %140 = vector.broadcast %cst_33 : f32 to vector<8x128xf32>
    %141 = vector.broadcast %cst_34 : f32 to vector<8x128xf32>
    %142 = arith.select %139, %140, %141 : vector<8x128xi1>, vector<8x128xf32>
    %cst_35 = arith.constant 1.000000e+00 : f32
    %143 = vector.broadcast %cst_35 : f32 to vector<8x128xf32>
    %144 = arith.subf %143, %20 : vector<8x128xf32>
    %145 = arith.select %139, %144, %20 : vector<8x128xi1>, vector<8x128xf32>
    %146 = arith.mulf %145, %145 : vector<8x128xf32>
    %147 = arith.mulf %142, %146 : vector<8x128xf32>
    %cst_36 = arith.constant 1.000000e+00 : f32
    %148 = vector.broadcast %cst_36 : f32 to vector<8x128xf32>
    %149 = arith.subf %148, %20 : vector<8x128xf32>
    %150 = arith.select %139, %20, %149 : vector<8x128xi1>, vector<8x128xf32>
    %151 = math.log %150 : vector<8x128xf32>
    %cst_37 = arith.constant 0.000000e+00 : f32
    %152 = vector.broadcast %cst_37 : f32 to vector<8x128xf32>
    %153 = arith.subf %152, %151 : vector<8x128xf32>
    %cst_38 = arith.constant -1.000000e+00 : f32
    %154 = vector.broadcast %cst_38 : f32 to vector<8x128xf32>
    %155 = arith.cmpf one, %137, %154 : vector<8x128xf32>
    %156 = arith.mulf %147, %153 : vector<8x128xf32>
    %cst_39 = arith.constant 0.000000e+00 : f32
    %157 = vector.broadcast %cst_39 : f32 to vector<8x128xf32>
    %158 = arith.select %155, %156, %157 : vector<8x128xi1>, vector<8x128xf32>
    %159 = arith.subf %108, %100 : vector<1x128xf32>
    %160 = arith.subf %112, %104 : vector<1x128xf32>
    %cst_40 = arith.constant 5.000000e-01 : f32
    %161 = vector.broadcast %cst_40 : f32 to vector<1x128xf32>
    %162 = arith.mulf %161, %159 : vector<1x128xf32>
    %163 = arith.addf %100, %162 : vector<1x128xf32>
    %cst_41 = arith.constant 5.000000e-01 : f32
    %164 = vector.broadcast %cst_41 : f32 to vector<1x128xf32>
    %165 = arith.mulf %164, %160 : vector<1x128xf32>
    %166 = arith.addf %104, %165 : vector<1x128xf32>
    %cst_42 = arith.constant 1.000000e+00 : f32
    %167 = vector.broadcast %cst_42 : f32 to vector<1x128xf32>
    %168 = arith.maximumf %159, %167 : vector<1x128xf32>
    %cst_43 = arith.constant 1.000000e+00 : f32
    %169 = vector.broadcast %cst_43 : f32 to vector<1x128xf32>
    %170 = arith.maximumf %160, %169 : vector<1x128xf32>
    %171 = arith.subf %166, %36 : vector<1x128xf32>
    %172 = arith.divf %171, %30 : vector<1x128xf32>
    %cst_44 = arith.constant 1.000000e-01 : f32
    %173 = vector.broadcast %cst_44 : f32 to vector<1x128xf32>
    %174 = arith.divf %172, %173 : vector<1x128xf32>
    %175 = arith.subf %163, %33 : vector<1x128xf32>
    %176 = arith.divf %175, %29 : vector<1x128xf32>
    %cst_45 = arith.constant 1.000000e-01 : f32
    %177 = vector.broadcast %cst_45 : f32 to vector<1x128xf32>
    %178 = arith.divf %176, %177 : vector<1x128xf32>
    %179 = arith.divf %170, %30 : vector<1x128xf32>
    %180 = math.log %179 : vector<1x128xf32>
    %cst_46 = arith.constant 2.000000e-01 : f32
    %181 = vector.broadcast %cst_46 : f32 to vector<1x128xf32>
    %182 = arith.divf %180, %181 : vector<1x128xf32>
    %183 = arith.divf %168, %29 : vector<1x128xf32>
    %184 = math.log %183 : vector<1x128xf32>
    %cst_47 = arith.constant 2.000000e-01 : f32
    %185 = vector.broadcast %cst_47 : f32 to vector<1x128xf32>
    %186 = arith.divf %184, %185 : vector<1x128xf32>
    %187 = vector.extract_strided_slice %16 {offsets = [0, 0], sizes = [1, 128], strides = [1, 1]} : vector<4x128xf32> to vector<1x128xf32>
    %188 = arith.subf %174, %187 : vector<1x128xf32>
    %189 = math.absf %188 : vector<1x128xf32>
    %cst_48 = arith.constant 0.111111112 : f32
    %190 = vector.broadcast %cst_48 : f32 to vector<1x128xf32>
    %191 = arith.cmpf ole, %189, %190 : vector<1x128xf32>
    %cst_49 = arith.constant 4.500000e+00 : f32
    %192 = vector.broadcast %cst_49 : f32 to vector<1x128xf32>
    %193 = arith.mulf %192, %189 : vector<1x128xf32>
    %194 = arith.mulf %193, %189 : vector<1x128xf32>
    %cst_50 = arith.constant 0.055555556 : f32
    %195 = vector.broadcast %cst_50 : f32 to vector<1x128xf32>
    %196 = arith.subf %189, %195 : vector<1x128xf32>
    %197 = arith.select %191, %194, %196 : vector<1x128xi1>, vector<1x128xf32>
    %198 = vector.extract_strided_slice %16 {offsets = [1, 0], sizes = [1, 128], strides = [1, 1]} : vector<4x128xf32> to vector<1x128xf32>
    %199 = arith.subf %178, %198 : vector<1x128xf32>
    %200 = math.absf %199 : vector<1x128xf32>
    %cst_51 = arith.constant 0.111111112 : f32
    %201 = vector.broadcast %cst_51 : f32 to vector<1x128xf32>
    %202 = arith.cmpf ole, %200, %201 : vector<1x128xf32>
    %cst_52 = arith.constant 4.500000e+00 : f32
    %203 = vector.broadcast %cst_52 : f32 to vector<1x128xf32>
    %204 = arith.mulf %203, %200 : vector<1x128xf32>
    %205 = arith.mulf %204, %200 : vector<1x128xf32>
    %cst_53 = arith.constant 0.055555556 : f32
    %206 = vector.broadcast %cst_53 : f32 to vector<1x128xf32>
    %207 = arith.subf %200, %206 : vector<1x128xf32>
    %208 = arith.select %202, %205, %207 : vector<1x128xi1>, vector<1x128xf32>
    %209 = arith.addf %197, %208 : vector<1x128xf32>
    %210 = vector.extract_strided_slice %16 {offsets = [2, 0], sizes = [1, 128], strides = [1, 1]} : vector<4x128xf32> to vector<1x128xf32>
    %211 = arith.subf %182, %210 : vector<1x128xf32>
    %212 = math.absf %211 : vector<1x128xf32>
    %cst_54 = arith.constant 0.111111112 : f32
    %213 = vector.broadcast %cst_54 : f32 to vector<1x128xf32>
    %214 = arith.cmpf ole, %212, %213 : vector<1x128xf32>
    %cst_55 = arith.constant 4.500000e+00 : f32
    %215 = vector.broadcast %cst_55 : f32 to vector<1x128xf32>
    %216 = arith.mulf %215, %212 : vector<1x128xf32>
    %217 = arith.mulf %216, %212 : vector<1x128xf32>
    %cst_56 = arith.constant 0.055555556 : f32
    %218 = vector.broadcast %cst_56 : f32 to vector<1x128xf32>
    %219 = arith.subf %212, %218 : vector<1x128xf32>
    %220 = arith.select %214, %217, %219 : vector<1x128xi1>, vector<1x128xf32>
    %221 = arith.addf %209, %220 : vector<1x128xf32>
    %222 = vector.extract_strided_slice %16 {offsets = [3, 0], sizes = [1, 128], strides = [1, 1]} : vector<4x128xf32> to vector<1x128xf32>
    %223 = arith.subf %186, %222 : vector<1x128xf32>
    %224 = math.absf %223 : vector<1x128xf32>
    %cst_57 = arith.constant 0.111111112 : f32
    %225 = vector.broadcast %cst_57 : f32 to vector<1x128xf32>
    %226 = arith.cmpf ole, %224, %225 : vector<1x128xf32>
    %cst_58 = arith.constant 4.500000e+00 : f32
    %227 = vector.broadcast %cst_58 : f32 to vector<1x128xf32>
    %228 = arith.mulf %227, %224 : vector<1x128xf32>
    %229 = arith.mulf %228, %224 : vector<1x128xf32>
    %cst_59 = arith.constant 0.055555556 : f32
    %230 = vector.broadcast %cst_59 : f32 to vector<1x128xf32>
    %231 = arith.subf %224, %230 : vector<1x128xf32>
    %232 = arith.select %226, %229, %231 : vector<1x128xi1>, vector<1x128xf32>
    %233 = arith.addf %221, %232 : vector<1x128xf32>
    %234 = arith.mulf %122, %233 : vector<1x128xf32>
    %c0_60 = arith.constant 0 : index
    %c0_61 = arith.constant 0 : index
    %235 = vector.load %arg9[%c0_60, %c0_61] : memref<8x128xf32, #tpu.memory_space<vmem>>, vector<8x128xf32>
    %236 = arith.addf %235, %158 : vector<8x128xf32>
    %c0_62 = arith.constant 0 : index
    %c0_63 = arith.constant 0 : index
    %237 = vector.load %arg9[%c0_62, %c0_63] : memref<8x128xf32, #tpu.memory_space<vmem>>, vector<8x128xf32>
    tpu.vector_store %arg9[%c0_62, %c0_63], %236 {strides = array<i32>} : memref<8x128xf32, #tpu.memory_space<vmem>>, vector<8x128xf32>,
    %c0_64 = arith.constant 0 : index
    %c0_65 = arith.constant 0 : index
    %238 = vector.load %arg10[%c0_64, %c0_65] : memref<1x128xf32, #tpu.memory_space<vmem>>, vector<1x128xf32>
    %239 = arith.addf %238, %234 : vector<1x128xf32>
    %c0_66 = arith.constant 0 : index
    %c0_67 = arith.constant 0 : index
    %240 = vector.load %arg10[%c0_66, %c0_67] : memref<1x128xf32, #tpu.memory_space<vmem>>, vector<1x128xf32>
    tpu.vector_store %arg10[%c0_66, %c0_67], %239 {strides = array<i32>} : memref<1x128xf32, #tpu.memory_space<vmem>>, vector<1x128xf32>,
    %c0_68 = arith.constant 0 : index
    %c0_69 = arith.constant 0 : index
    %241 = vector.load %arg11[%c0_68, %c0_69] : memref<1x128xf32, #tpu.memory_space<vmem>>, vector<1x128xf32>
    %242 = arith.addf %241, %122 : vector<1x128xf32>
    %c0_70 = arith.constant 0 : index
    %c0_71 = arith.constant 0 : index
    %243 = vector.load %arg11[%c0_70, %c0_71] : memref<1x128xf32, #tpu.memory_space<vmem>>, vector<1x128xf32>
    tpu.vector_store %arg11[%c0_70, %c0_71], %242 {strides = array<i32>} : memref<1x128xf32, #tpu.memory_space<vmem>>, vector<1x128xf32>,
    %c1_i32 = arith.constant 1 : i32
    %244 = arith.cmpi eq, %arg1, %c1_i32 : i32
    %245 = arith.extui %244 : i1 to i32
    %c0_i32_72 = arith.constant 0 : i32
    %246 = arith.cmpi ne, %245, %c0_i32_72 : i32
    scf.if %246 {
      %c0_73 = arith.constant 0 : index
      %c0_74 = arith.constant 0 : index
      %247 = vector.load %arg11[%c0_73, %c0_74] : memref<1x128xf32, #tpu.memory_space<vmem>>, vector<1x128xf32>
      %248 = vector.shape_cast %247 : vector<1x128xf32> to vector<1x1x128xf32>
      %cst_75 = arith.constant dense<0.000000e+00> : vector<1xf32>
      %249 = vector.multi_reduction <add>, %248, %cst_75 [1, 2] : vector<1x1x128xf32> to vector<1xf32>
      %250 = vector.shape_cast %249 : vector<1xf32> to vector<1x1x1xf32>
      %251 = vector.extract %250[0, 0, 0] : f32 from vector<1x1x1xf32>
      %252 = vector.broadcast %251 : f32 to vector<1x1xf32>
      %c0_76 = arith.constant 0 : index
      %c0_77 = arith.constant 0 : index
      %253 = vector.load %arg9[%c0_76, %c0_77] : memref<8x128xf32, #tpu.memory_space<vmem>>, vector<8x128xf32>
      %254 = vector.shape_cast %253 : vector<8x128xf32> to vector<1x8x128xf32>
      %cst_78 = arith.constant dense<0.000000e+00> : vector<1xf32>
      %255 = vector.multi_reduction <add>, %254, %cst_78 [1, 2] : vector<1x8x128xf32> to vector<1xf32>
      %256 = vector.shape_cast %255 : vector<1xf32> to vector<1x1x1xf32>
      %257 = vector.extract %256[0, 0, 0] : f32 from vector<1x1x1xf32>
      %258 = vector.broadcast %257 : f32 to vector<1x1xf32>
      %c0_79 = arith.constant 0 : index
      %c0_80 = arith.constant 0 : index
      %259 = vector.load %arg10[%c0_79, %c0_80] : memref<1x128xf32, #tpu.memory_space<vmem>>, vector<1x128xf32>
      %260 = vector.shape_cast %259 : vector<1x128xf32> to vector<1x1x128xf32>
      %cst_81 = arith.constant dense<0.000000e+00> : vector<1xf32>
      %261 = vector.multi_reduction <add>, %260, %cst_81 [1, 2] : vector<1x1x128xf32> to vector<1xf32>
      %262 = vector.shape_cast %261 : vector<1xf32> to vector<1x1x1xf32>
      %263 = vector.extract %262[0, 0, 0] : f32 from vector<1x1x1xf32>
      %264 = vector.broadcast %263 : f32 to vector<1x1xf32>
      %cst_82 = arith.constant 1.000000e+00 : f32
      %265 = vector.broadcast %cst_82 : f32 to vector<1x1xf32>
      %266 = arith.maximumf %252, %265 : vector<1x1xf32>
      %267 = arith.divf %258, %266 : vector<1x1xf32>
      %cst_83 = arith.constant 4.000000e+00 : f32
      %268 = vector.broadcast %cst_83 : f32 to vector<1x1xf32>
      %269 = arith.mulf %268, %252 : vector<1x1xf32>
      %cst_84 = arith.constant 1.000000e+00 : f32
      %270 = vector.broadcast %cst_84 : f32 to vector<1x1xf32>
      %271 = arith.maximumf %269, %270 : vector<1x1xf32>
      %272 = arith.divf %264, %271 : vector<1x1xf32>
      %273 = vector.shape_cast %267 : vector<1x1xf32> to vector<1x1x1xf32>
      %274 = vector.shape_cast %273 : vector<1x1x1xf32> to vector<1x1x1xf32>
      %275 = vector.broadcast %274 : vector<1x1x1xf32> to vector<1x1x128xf32>
      %c0_85 = arith.constant 0 : index
      %c0_86 = arith.constant 0 : index
      %c0_87 = arith.constant 0 : index
      %276 = vector.load %arg7[%c0_85, %c0_86, %c0_87] : memref<1x1x128xf32, #tpu.memory_space<vmem>>, vector<1x1x128xf32>
      tpu.vector_store %arg7[%c0_85, %c0_86, %c0_87], %275 {strides = array<i32>} : memref<1x1x128xf32, #tpu.memory_space<vmem>>, vector<1x1x128xf32>,
      %277 = vector.shape_cast %272 : vector<1x1xf32> to vector<1x1x1xf32>
      %278 = vector.shape_cast %277 : vector<1x1x1xf32> to vector<1x1x1xf32>
      %279 = vector.broadcast %278 : vector<1x1x1xf32> to vector<1x1x128xf32>
      %c0_88 = arith.constant 0 : index
      %c0_89 = arith.constant 0 : index
      %c0_90 = arith.constant 0 : index
      %280 = vector.load %arg8[%c0_88, %c0_89, %c0_90] : memref<1x1x128xf32, #tpu.memory_space<vmem>>, vector<1x1x128xf32>
      tpu.vector_store %arg8[%c0_88, %c0_89, %c0_90], %279 {strides = array<i32>} : memref<1x1x128xf32, #tpu.memory_space<vmem>>, vector<1x1x128xf32>,
    } else {
    }
    return
  }
  func.func @transform_0(%arg0: i32, %arg1: i32) -> (i32, i32, i32) {
    %c0_i32 = arith.constant 0 : i32
    %c0_i32_0 = arith.constant 0 : i32
    return %arg0, %c0_i32, %arg1 : i32, i32, i32
  }
  func.func @transform_1(%arg0: i32, %arg1: i32) -> (i32, i32) {
    %c0_i32 = arith.constant 0 : i32
    %c0_i32_0 = arith.constant 0 : i32
    %c0_i32_1 = arith.constant 0 : i32
    return %c0_i32, %c0_i32_0 : i32, i32
  }
  func.func @transform_2(%arg0: i32, %arg1: i32) -> (i32, i32) {
    %c0_i32 = arith.constant 0 : i32
    %c0_i32_0 = arith.constant 0 : i32
    %c0_i32_1 = arith.constant 0 : i32
    return %c0_i32, %c0_i32_0 : i32, i32
  }
  func.func @transform_3(%arg0: i32, %arg1: i32) -> (i32, i32) {
    %c0_i32 = arith.constant 0 : i32
    %c0_i32_0 = arith.constant 0 : i32
    %c0_i32_1 = arith.constant 0 : i32
    return %c0_i32, %c0_i32_0 : i32, i32
  }
  func.func @transform_4(%arg0: i32, %arg1: i32) -> (i32, i32, i32) {
    %c0_i32 = arith.constant 0 : i32
    %c0_i32_0 = arith.constant 0 : i32
    %c0_i32_1 = arith.constant 0 : i32
    return %arg0, %c0_i32, %c0_i32_0 : i32, i32, i32
  }
  func.func @transform_5(%arg0: i32, %arg1: i32) -> (i32, i32, i32) {
    %c0_i32 = arith.constant 0 : i32
    %c0_i32_0 = arith.constant 0 : i32
    %c0_i32_1 = arith.constant 0 : i32
    return %arg0, %c0_i32, %c0_i32_0 : i32, i32, i32
  }
  func.func @transform_6(%arg0: i32, %arg1: i32) -> (i32, i32, i32) {
    %c0_i32 = arith.constant 0 : i32
    %c0_i32_0 = arith.constant 0 : i32
    %c0_i32_1 = arith.constant 0 : i32
    return %arg0, %c0_i32, %c0_i32_0 : i32, i32, i32
  }
}

</mosaic_0001>

<llo_original>
// kernel: tpu_custom_call.1
$region0: #{tpu_custom_call.1}
  #allocation0 [shape = 'u32[]', space=smem, size = 0x4, offset = 0x4, fixed_abs, tag = 'smem constant byte address 0x4 - core index']
  #allocation1 [shape = 'u32[72,128]{1,0:T(1,128)}', space=vmem, size = 0x9000, scoped, tag = 'internal scratch']
  #allocation2 [shape = 'f32[8,128]{1,0:T(8,128)}', space=vmem, size = 0x1000, scoped, tag = 'scratch operand']
  #allocation3 [shape = 'f32[1,128]{1,0:T(1,128)}', space=vmem, size = 0x200, scoped, tag = 'scratch operand']
  #allocation4 [shape = 'f32[1,128]{1,0:T(1,128)}', space=vmem, size = 0x200, scoped, tag = 'scratch operand']
  %s0 = inlined_call_operand.vmem [shape: f32[2,4,256], index: 0, kind: input, shape index: {}]
  %s1 = inlined_call_operand.vmem [shape: f32[12,4], index: 1, kind: input, shape index: {}]
  %s2 = inlined_call_operand.vmem [shape: f32[12,1], index: 2, kind: input, shape index: {}]
  %s3 = inlined_call_operand.vmem [shape: f32[4,256], index: 3, kind: input, shape index: {}]
  %s4 = inlined_call_operand.vmem [shape: f32[2,8,5], index: 4, kind: input, shape index: {}]
  %s5 = inlined_call_operand.hbm [shape: f32[2,1,128], index: 5, kind: output, shape index: {0}]
  %s6 = inlined_call_operand.hbm [shape: f32[2,1,128], index: 6, kind: output, shape index: {1}]
  %7 = xla_tuple %s5, %s6
  %s8 = sld [smem:[#allocation0]]
  $region69: #{tpu_custom_call.1} parent=0
    _
  %s10 = ssub.s32 1, %s8
  %s11 = scalar_select 0, %s10, %s8
  $region1: #{tpu_custom_call.1} parent=0
    #allocation5 [shape = 'u8[1024]{0}', space=vmem, size = 0x400, scoped, tag = 'output window, operand 0']
    #allocation6 [shape = 's32[2]{0}', space=sflag, size = 0x8, scoped, tag = 'scoped memory for tpu_custom_call.1']
    #allocation7 [shape = 'u8[1024]{0}', space=vmem, size = 0x400, scoped, tag = 'output window, operand 1']
    #allocation8 [shape = 's32[2]{0}', space=sflag, size = 0x8, scoped, tag = 'scoped memory for tpu_custom_call.1']
    %12 = vsyncpa [#allocation6], 0
    %s13 = scalar_lea.sflag [#allocation6], 1
    %14 = vsyncpa %s13, 0
    %15 = vsyncpa [#allocation8], 0
    %s16 = scalar_lea.sflag [#allocation8], 1
    %17 = vsyncpa %s16, 0
    loop: start=0, step=1, limit=6
    $region2: #{tpu_custom_call.1} parent=1 // loop_pre_header
      _
    $region3: #{tpu_custom_call.1} parent=1 // loop_header
      %s19 = sphi 0, %s23
      %p20 = scmp.ge.s32.totalorder %s19, 6
      %s26 = sphi 0, %s38
      %s27 = sphi 0, %s34
      %s28 = sphi 0, %s26
      %s29 = sphi 0, %s27
      %s30 = sphi 0, %s28
      %s31 = sphi 0, %s29
      %s43 = sphi 0, %s45
      %s46 = sphi 0, %s43
      %s47 = sphi 0, %s46
      %s63 = sphi 0, %s47
      %s67 = sphi 0, %s67
      %s69 = sphi 0, %s67
      %s70 = sphi 0, %s69
      %s84 = sphi 0, %s70
      %s88 = sphi 0, %s88
      %s90 = sphi 0, %s88
      %s91 = sphi 0, %s90
      %s105 = sphi 0, %s91
      %s109 = sphi 0, %s109
      %s111 = sphi 0, %s109
      %s112 = sphi 0, %s111
      %s126 = sphi 0, %s112
      %s132 = sphi 0, %s134
      %s135 = sphi 0, %s132
      %s136 = sphi 0, %s135
      %s152 = sphi 0, %s136
      %s158 = sphi 0, %s160
      %s161 = sphi 0, %s158
      %s162 = sphi 0, %s161
      %s178 = sphi 0, %s162
      %s184 = sphi 0, %s186
      %s187 = sphi 0, %s184
      %s188 = sphi 0, %s187
      %s204 = sphi 0, %s188
    $region4: #{tpu_custom_call.1} parent=1 // loop_header_branch
      %22 = sbr.rel (%p20) target = $region8
    $region5: #{tpu_custom_call.1} parent=1 // loop_body
      %s24 = ssub.s32 %s19, 1
      %s25 = ssub.s32 %s19, 2
      %s32 = sadd.s32 1, %s27
      %p33 = scmp.ge.s32.totalorder %s32, 2
      %s34 = scalar_select %p33, 0, %s32
      %s35 = sadd.s32 1, %s26
      %s36 = scalar_select %p33, %s35, %s26
      %p37 = scmp.ge.s32.totalorder %s36, 2
      %s38 = scalar_select %p37, 0, %s36
      %s39 = ssub.s32 %s26, %s38
      %s40 = ssub.s32 %s27, %s34
      %s41 = sor.u32 %s39, %s40
      %p42 = scmp.eq.s32.totalorder %s41, 0
      %s44 = sadd.s32 %s43, 1
      %s45 = scalar_select %p42, %s43, %s44
      %p48 = pneg %p42
      %p49 = scmp.eq.s32.totalorder %s19, 3
      %p50 = por %p48, %p49
      %p51 = scmp.ne.s32.totalorder %s43, %s46
      %p52 = scmp.eq.s32.totalorder %s19, 0
      %p53 = por %p51, %p52
      %p54 = scmp.ne.s32.totalorder %s43, %s46
      %p55 = scmp.eq.s32.totalorder %s24, 3
      %p56 = por %p54, %p55
      %p57 = scmp.ne.s32.totalorder %s46, %s47
      %p58 = scmp.eq.s32.totalorder %s24, 0
      %p59 = por %p57, %p58
      %p60 = scmp.ne.s32.totalorder %s46, %s47
      %p61 = scmp.eq.s32.totalorder %s25, 3
      %p62 = por %p60, %p61
      %p64 = scmp.ne.s32.totalorder %s47, %s63
      %p65 = scmp.eq.s32.totalorder %s25, 0
      %p66 = por %p64, %p65
      %s68 = sadd.s32 %s67, 1
      %p71 = scmp.eq.s32.totalorder %s19, 3
      %p72 = scmp.ne.s32.totalorder %s67, %s69
      %p73 = scmp.eq.s32.totalorder %s19, 0
      %p74 = por %p72, %p73
      %p75 = scmp.ne.s32.totalorder %s67, %s69
      %p76 = scmp.eq.s32.totalorder %s24, 3
      %p77 = por %p75, %p76
      %p78 = scmp.ne.s32.totalorder %s69, %s70
      %p79 = scmp.eq.s32.totalorder %s24, 0
      %p80 = por %p78, %p79
      %p81 = scmp.ne.s32.totalorder %s69, %s70
      %p82 = scmp.eq.s32.totalorder %s25, 3
      %p83 = por %p81, %p82
      %p85 = scmp.ne.s32.totalorder %s70, %s84
      %p86 = scmp.eq.s32.totalorder %s25, 0
      %p87 = por %p85, %p86
      %s89 = sadd.s32 %s88, 1
      %p92 = scmp.eq.s32.totalorder %s19, 3
      %p93 = scmp.ne.s32.totalorder %s88, %s90
      %p94 = scmp.eq.s32.totalorder %s19, 0
      %p95 = por %p93, %p94
      %p96 = scmp.ne.s32.totalorder %s88, %s90
      %p97 = scmp.eq.s32.totalorder %s24, 3
      %p98 = por %p96, %p97
      %p99 = scmp.ne.s32.totalorder %s90, %s91
      %p100 = scmp.eq.s32.totalorder %s24, 0
      %p101 = por %p99, %p100
      %p102 = scmp.ne.s32.totalorder %s90, %s91
      %p103 = scmp.eq.s32.totalorder %s25, 3
      %p104 = por %p102, %p103
      %p106 = scmp.ne.s32.totalorder %s91, %s105
      %p107 = scmp.eq.s32.totalorder %s25, 0
      %p108 = por %p106, %p107
      %s110 = sadd.s32 %s109, 1
      %p113 = scmp.eq.s32.totalorder %s19, 3
      %p114 = scmp.ne.s32.totalorder %s109, %s111
      %p115 = scmp.eq.s32.totalorder %s19, 0
      %p116 = por %p114, %p115
      %p117 = scmp.ne.s32.totalorder %s109, %s111
      %p118 = scmp.eq.s32.totalorder %s24, 3
      %p119 = por %p117, %p118
      %p120 = scmp.ne.s32.totalorder %s111, %s112
      %p121 = scmp.eq.s32.totalorder %s24, 0
      %p122 = por %p120, %p121
      %p123 = scmp.ne.s32.totalorder %s111, %s112
      %p124 = scmp.eq.s32.totalorder %s25, 3
      %p125 = por %p123, %p124
      %p127 = scmp.ne.s32.totalorder %s112, %s126
      %p128 = scmp.eq.s32.totalorder %s25, 0
      %p129 = por %p127, %p128
      %s130 = ssub.s32 %s26, %s38
      %p131 = scmp.eq.s32.totalorder %s130, 0
      %s133 = sadd.s32 %s132, 1
      %s134 = scalar_select %p131, %s132, %s133
      %p137 = pneg %p131
      %p138 = scmp.eq.s32.totalorder %s19, 3
      %p139 = por %p137, %p138
      %p140 = scmp.ne.s32.totalorder %s132, %s135
      %p141 = scmp.eq.s32.totalorder %s19, 0
      %p142 = por %p140, %p141
      %p143 = scmp.ne.s32.totalorder %s132, %s135
      %p144 = scmp.eq.s32.totalorder %s24, 3
      %p145 = por %p143, %p144
      %p146 = scmp.ne.s32.totalorder %s135, %s136
      %p147 = scmp.eq.s32.totalorder %s24, 0
      %p148 = por %p146, %p147
      %p149 = scmp.ne.s32.totalorder %s135, %s136
      %p150 = scmp.eq.s32.totalorder %s25, 3
      %p151 = por %p149, %p150
      %p153 = scmp.ne.s32.totalorder %s136, %s152
      %p154 = scmp.eq.s32.totalorder %s25, 0
      %p155 = por %p153, %p154
      %s156 = ssub.s32 %s26, %s38
      %p157 = scmp.eq.s32.totalorder %s156, 0
      %s159 = sadd.s32 %s158, 1
      %s160 = scalar_select %p157, %s158, %s159
      %p163 = pneg %p157
      %p164 = scmp.eq.s32.totalorder %s19, 3
      %p165 = por %p163, %p164
      %p166 = scmp.ne.s32.totalorder %s158, %s161
      %p167 = scmp.eq.s32.totalorder %s19, 0
      %p168 = por %p166, %p167
      %p169 = scmp.ne.s32.totalorder %s158, %s161
      %p170 = scmp.eq.s32.totalorder %s24, 3
      %p171 = por %p169, %p170
      %p172 = scmp.ne.s32.totalorder %s161, %s162
      %p173 = scmp.eq.s32.totalorder %s24, 0
      %p174 = por %p172, %p173
      %p175 = scmp.ne.s32.totalorder %s161, %s162
      %p176 = scmp.eq.s32.totalorder %s25, 3
      %p177 = por %p175, %p176
      %p179 = scmp.ne.s32.totalorder %s162, %s178
      %p180 = scmp.eq.s32.totalorder %s25, 0
      %p181 = por %p179, %p180
      %s182 = ssub.s32 %s26, %s38
      %p183 = scmp.eq.s32.totalorder %s182, 0
      %s185 = sadd.s32 %s184, 1
      %s186 = scalar_select %p183, %s184, %s185
      %p189 = pneg %p183
      %p190 = scmp.eq.s32.totalorder %s19, 3
      %p191 = por %p189, %p190
      %p192 = scmp.ne.s32.totalorder %s184, %s187
      %p193 = scmp.eq.s32.totalorder %s19, 0
      %p194 = por %p192, %p193
      %p195 = scmp.ne.s32.totalorder %s184, %s187
      %p196 = scmp.eq.s32.totalorder %s24, 3
      %p197 = por %p195, %p196
      %p198 = scmp.ne.s32.totalorder %s187, %s188
      %p199 = scmp.eq.s32.totalorder %s24, 0
      %p200 = por %p198, %p199
      %p201 = scmp.ne.s32.totalorder %s187, %s188
      %p202 = scmp.eq.s32.totalorder %s25, 3
      %p203 = por %p201, %p202
      %p205 = scmp.ne.s32.totalorder %s188, %s204
      %p206 = scmp.eq.s32.totalorder %s25, 0
      %p207 = por %p205, %p206
      %p208 = scmp.le.s32.totalorder 1, %s19
      %p209 = scmp.lt.s32.totalorder %s19, 5
      %p210 = pnand %p208, %p209
      %p211 = pneg %p210
      // Predicated region
      $region9: #{tpu_custom_call.1} parent=5 // pred_check
        _
      $region10: #{tpu_custom_call.1} parent=5 // pred_check_branch
        %213 = sbr.rel (%p210) target = $region12
      $region11: #{tpu_custom_call.1} parent=5 // pred_region
        %s214 = ssub.s32 %s19, 1
        // Predicated region
        $region13: #{tpu_custom_call.1} parent=11 // pred_check
          %p215 = pneg %p80
        $region14: #{tpu_custom_call.1} parent=11 // pred_check_branch
          %217 = sbr.rel (%p215) target = $region16
        $region15: #{tpu_custom_call.1} parent=11 // pred_region
          _
        $region16: #{tpu_custom_call.1} parent=11 // pred_fallthru
          _
        // Predicated region
        $region17: #{tpu_custom_call.1} parent=11 // pred_check
          %p218 = pneg %p101
        $region18: #{tpu_custom_call.1} parent=11 // pred_check_branch
          %220 = sbr.rel (%p218) target = $region20
        $region19: #{tpu_custom_call.1} parent=11 // pred_region
          _
        $region20: #{tpu_custom_call.1} parent=11 // pred_fallthru
          _
        // Predicated region
        $region21: #{tpu_custom_call.1} parent=11 // pred_check
          %p221 = pneg %p122
        $region22: #{tpu_custom_call.1} parent=11 // pred_check_branch
          %223 = sbr.rel (%p221) target = $region24
        $region23: #{tpu_custom_call.1} parent=11 // pred_region
          _
        $region24: #{tpu_custom_call.1} parent=11 // pred_fallthru
          _
      $region12: #{tpu_custom_call.1} parent=5 // pred_fallthru
        _
      %p224 = scmp.lt.s32.totalorder %s19, 4
      // Predicated region
      $region25: #{tpu_custom_call.1} parent=5 // pred_check
        %p225 = pneg %p224
      $region26: #{tpu_custom_call.1} parent=5 // pred_check_branch
        %227 = sbr.rel (%p225) target = $region28
      $region27: #{tpu_custom_call.1} parent=5 // pred_region
        // Predicated region
        $region29: #{tpu_custom_call.1} parent=27 // pred_check
          %p228 = pneg %p53
        $region30: #{tpu_custom_call.1} parent=27 // pred_check_branch
          %230 = sbr.rel (%p228) target = $region32
        $region31: #{tpu_custom_call.1} parent=27 // pred_region
          %p231 = scmp.lt.s32.totalorder %s26, 1
          %s232 = scalar_select %p231, %s26, 1
          %p233 = scmp.lt.s32.totalorder %s27, 1
          %s234 = scalar_select %p233, %s27, 1
          %s235 = smul.addr %s232, 2
          %s236 = sadd.s32 %s234, %s235
          %s237 = smul.addr %s236, 4
          %s238 = scalar_lea.vmem %s0, %s237
        $region32: #{tpu_custom_call.1} parent=27 // pred_fallthru
          _
        // Predicated region
        $region33: #{tpu_custom_call.1} parent=27 // pred_check
          %p239 = pneg %p142
        $region34: #{tpu_custom_call.1} parent=27 // pred_check_branch
          %241 = sbr.rel (%p239) target = $region36
        $region35: #{tpu_custom_call.1} parent=27 // pred_region
          %p242 = scmp.lt.s32.totalorder %s26, 1
          %s243 = scalar_select %p242, %s26, 1
          %s244 = smul.addr %s243, 8
          %s245 = scalar_lea.vmem %s4, %s244
        $region36: #{tpu_custom_call.1} parent=27 // pred_fallthru
          _
      $region28: #{tpu_custom_call.1} parent=5 // pred_fallthru
        _
      %p246 = scmp.le.s32.totalorder 1, %s19
      %p247 = scmp.lt.s32.totalorder %s19, 5
      %p248 = pnand %p246, %p247
      %p249 = pneg %p248
      // Predicated region
      $region37: #{tpu_custom_call.1} parent=5 // pred_check
        _
      $region38: #{tpu_custom_call.1} parent=5 // pred_check_branch
        %251 = sbr.rel (%p248) target = $region40
      $region39: #{tpu_custom_call.1} parent=5 // pred_region
        %s252 = ssub.s32 %s19, 1
        %p253 = scmp.lt.s32.totalorder %s28, 1
        %s254 = scalar_select %p253, %s28, 1
        %p255 = scmp.lt.s32.totalorder %s29, 1
        %s256 = scalar_select %p255, %s29, 1
        %s257 = smul.addr %s254, 2
        %s258 = sadd.s32 %s256, %s257
        %s259 = smul.addr %s258, 4
        %s260 = scalar_lea.vmem %s0, %s259
        %p261 = pneg %p59
        %p262 = pneg %p56
        %p263 = pneg %p80
        %p264 = pneg %p77
        %p265 = pneg %p101
        %p266 = pneg %p98
        %p267 = pneg %p122
        %p268 = pneg %p119
        %p269 = scmp.lt.s32.totalorder %s28, 1
        %s270 = scalar_select %p269, %s28, 1
        %s271 = smul.addr %s270, 8
        %s272 = scalar_lea.vmem %s4, %s271
        %p273 = pneg %p148
        %p274 = pneg %p145
        %p275 = pneg %p174
        %p276 = pneg %p171
        %s277 = sand.u32 %s161, 1
        %s278 = scalar_lea.sflag [#allocation6], %s277
        %s279 = sand.u32 %s161, 1
        %s280 = scalar_lea.vmem [#allocation5], %s279
        %p281 = pneg %p200
        %p282 = pneg %p197
        %s283 = sand.u32 %s187, 1
        %s284 = scalar_lea.sflag [#allocation8], %s283
        %s285 = sand.u32 %s187, 1
        %s286 = scalar_lea.vmem [#allocation7], %s285
        %p287 = scmp.lt.s32.totalorder %s28, 1
        %s288 = scalar_select %p287, %s28, 1
        %p289 = scmp.lt.s32.totalorder %s29, 1
        %s290 = scalar_select %p289, %s29, 1
        %s291 = smul.addr %s288, 2
        %s292 = sadd.s32 %s290, %s291
        %s293 = smul.addr %s292, 4
        %s294 = scalar_lea.vmem %s0, %s293
        %p295 = scmp.lt.s32.totalorder %s28, 1
        %s296 = scalar_select %p295, %s28, 1
        %s297 = smul.addr %s296, 8
        %s298 = scalar_lea.vmem %s4, %s297
        %p299 = scmp.eq.s32.totalorder %s29, 0
        // Predicated region
        $region41: #{tpu_custom_call.1} parent=39 // pred_check
          %p300 = pneg %p299
        $region42: #{tpu_custom_call.1} parent=39 // pred_check_branch
          %302 = sbr.rel (%p300) target = $region44
        $region43: #{tpu_custom_call.1} parent=39 // pred_region
          %303 = vst [vmem:[#allocation2] sm:$0xff] 0.0
          %304 = vst [vmem:[#allocation3] sm:$0x1] 0.0
          %305 = vst [vmem:[#allocation4] sm:$0x1] 0.0
        $region44: #{tpu_custom_call.1} parent=39 // pred_fallthru
          _
        %v306 = vld [vmem:[%s294] sm:$0xf]
        %v307 = vld [vmem:[%s1] sm:$0xff]
        %v308 = vld [vmem:[%s1 + $0x8] sm:$0xf]
        %v309 = vld [vmem:[%s2] sm:$0xff]
        %v310 = vld [vmem:[%s2 + $0x8] sm:$0xf]
        %312 = vset.pattern.permute.xlu0 0
        %313 = vperm.xlu0 %312, %v309
        %v314 = vpop.permute.xlu0 %313
        %317 = vset.pattern.permute.xlu0 0
        %318 = vperm.xlu0 %317, %v310
        %v319 = vpop.permute.xlu0 %318
        %vm321 = vcmask 31744
        %v323 = vsel %vm321, %v307, 0
        %v326 = vsel %vm321, %v308, 0
        %vm328 = vcmask 1043456
        %v330 = vsel %vm328, %v306, 0
        %332 = vmatpush.msra.mxu0 0.0
        %333 = vmatpush.msra.mxu0 0.0
        %334 = vmatpush.msra.mxu0 0.0
        %335 = vmatpush.msra.mxu0 0.0
        %336 = vmatpush.msra.mxu0 0.0
        %337 = vmatpush.msra.mxu0 0.0
        %338 = vmatpush.msra.mxu0 0.0
        %339 = vmatpush.msra.mxu0 0.0
        %340 = vmatpush.msra.mxu0 0.0
        %341 = vmatpush.msra.mxu0 0.0
        %342 = vmatpush.msra.mxu0 0.0
        %343 = vmatpush.msra.mxu0 0.0
        %344 = vmatpush.msra.mxu0 0.0
        %345 = vmatpush.msra.mxu0 0.0
        %346 = vmatpush.msra.mxu0 0.0
        %347 = vmatpush.msra.mxu0 %v330
        %348 = vmatmul.f32.gmra.mxu0 %v323
        %v349 = vpop.f32.mrf.mxu0
        %v350 = vadd.f32 %v314, %v349
        %351 = vmatmul.f32.gmra.mxu0 %v326
        %v352 = vpop.f32.mrf.mxu0
        %v353 = vadd.f32 %v319, %v352
        %354 = vdwg.mxu0
        %v355 = vxor.u32 %v350, 2147483648
        %v356 = vmul.f32 %v355, 1.442695
        %v357 = vpow.pop %v356
        %v358 = vadd.f32 %v357, 1.0
        %v359 = vrcp.pop %v358
        %v360 = vmul.f32 %v358, %v359
        %v361 = vsub.f32 1.0, %v360
        %v362 = vmul.f32 %v359, %v361
        %v363 = vadd.f32 %v359, %v362
        %vm364 = vweird.f32 %v358
        %vm365 = vweird.f32 %v359
        %vm366 = vmor %vm364, %vm365
        %v367 = vsel %vm366, %v359, %v363
        %v368 = vand.u32 2147483647, %v358
        %vm369 = vcmp.eq.f32.partialorder %v368, 8.507059e+37
        %v370 = vand.u32 %v358, 2147483648
        %v371 = vor.u32 1.1754944e-38, %v370
        %v372 = vsel %vm369, %v371, %v367
        %v373 = vmul.f32 1.0, %v372
        %v374 = vmax.f32 %v373, 0.0001
        %v375 = vmin.f32 %v374, 0.9999
        %s376 = smul.u32 %s29, 128
        %s377 = sshra.s32 %s376, 7
        %s378 = sand.u32 %s376, 127
        %s379 = smul.addr %s377, 4
        %s380 = scalar_lea.vmem %s3, %s379
        %v381 = vld [vmem:[%s380] sm:$0xf]
        %v383 = vrot.slane %v381, 6
        %v385 = vsub.f32 %v381, %v383
        %v386 = vmul.f32 %v385, 0.5
        %v388 = vrot.slane %v386, 6
        %v389 = vrot.slane %v388, 4
        %v391 = vadd.f32 %v381, %v389
        %v392 = vld [vmem:[%s298] sm:$0xff]
        %vm393 = vcmp.ne.f32.partialorder %v392, -1.0
        %395 = vrot.lane.b32.xlu0 %v392, 2
        %v396 = vpop.permute.xlu0 %395
        %v398 = vsub.f32 %v392, %v396
        %400 = vrot.lane.b32.xlu0 %v398, 127
        %v401 = vpop.permute.xlu0 %400
        %v403 = vmul.f32 %v398, %v401
        %v404 = vperm.slane %v381, 3
        %405 = vset.pattern.permute.xlu0 2
        %406 = vperm.xlu0 %405, %v392
        %v407 = vpop.permute.xlu0 %406
        %v409 = vmin.f32 %v404, %v407
        %v410 = vperm.slane %v381, 1
        %411 = vset.pattern.permute.xlu0 0
        %412 = vperm.xlu0 %411, %v392
        %v413 = vpop.permute.xlu0 %412
        %v415 = vmax.f32 %v410, %v413
        %v416 = vsub.f32 %v409, %v415
        %v417 = vmax.f32 %v416, 0.0
        %v418 = vperm.slane %v381, 2
        %419 = vset.pattern.permute.xlu0 3
        %420 = vperm.xlu0 %419, %v392
        %v421 = vpop.permute.xlu0 %420
        %v423 = vmin.f32 %v418, %v421
        %v424 = vperm.slane %v381, 0
        %425 = vset.pattern.permute.xlu0 1
        %426 = vperm.xlu0 %425, %v392
        %v427 = vpop.permute.xlu0 %426
        %v429 = vmax.f32 %v424, %v427
        %v430 = vsub.f32 %v423, %v429
        %v431 = vmax.f32 %v430, 0.0
        %v433 = vrot.slane %v385, 7
        %v435 = vmul.f32 %v385, %v433
        %v436 = vperm.slane %v435, 3
        %438 = vset.pattern.permute.xlu0 2
        %439 = vperm.xlu0 %438, %v403
        %v440 = vpop.permute.xlu0 %439
        %v442 = vadd.f32 %v436, %v440
        %v443 = vmul.f32 %v417, %v431
        %v444 = vsub.f32 %v442, %v443
        %v445 = vmax.f32 %v444, 1e-08
        %v446 = vrcp.pop %v445
        %v447 = vmul.f32 %v445, %v446
        %v448 = vsub.f32 1.0, %v447
        %v449 = vmul.f32 %v446, %v448
        %v450 = vadd.f32 %v446, %v449
        %vm451 = vweird.f32 %v445
        %vm452 = vweird.f32 %v446
        %vm453 = vmor %vm451, %vm452
        %v454 = vsel %vm453, %v446, %v450
        %v455 = vand.u32 2147483647, %v445
        %vm456 = vcmp.eq.f32.partialorder %v455, 8.507059e+37
        %v457 = vand.u32 %v445, 2147483648
        %v458 = vor.u32 1.1754944e-38, %v457
        %v459 = vsel %vm456, %v458, %v454
        %v460 = vmul.f32 %v443, %v459
        %v461 = vsel %vm393, 1, 0
        %462 = vset.pattern.permute.xlu0 4
        %463 = vperm.xlu0 %462, %v461
        %v464 = vpop.permute.xlu0 %463
        %vm465 = vcmp.eq.s32.totalorder %v464, 1
        %v466 = vsel %vm465, %v460, -1.0
        %v467 = vrot.slane %v466, 4
        %v468 = vmax.f32 %v466, %v467
        %v469 = vrot.slane %v468, 2
        %v470 = vmax.f32 %v468, %v469
        %v471 = vrot.slane %v470, 1
        %v472 = vmax.f32 %v470, %v471
        %v473 = vlaneseq
        %v474 = vshrl.u32 %v473, 7
        %vm475 = vcmp.eq.f32.partialorder %v466, %v472
        %v476 = vsel %vm475, %v474, 8
        %v477 = vrot.slane %v476, 4
        %vm478 = vcmp.lt.s32.totalorder %v476, %v477
        %v479 = vsel %vm478, %v476, %v477
        %v480 = vrot.slane %v479, 2
        %vm481 = vcmp.lt.s32.totalorder %v479, %v480
        %v482 = vsel %vm481, %v479, %v480
        %v483 = vrot.slane %v482, 1
        %vm484 = vcmp.lt.s32.totalorder %v482, %v483
        %v485 = vsel %vm484, %v482, %v483
        %vm486 = vcmp.eq.s32.totalorder %v474, %v485
        %v487 = vsel %vm486, 1, 0
        %v488 = vcvt.s32.f32 %v487
        %v489 = vmul.f32 %v488, %v413
        %v490 = vrot.slane %v489, 4
        %v491 = vadd.f32 %v489, %v490
        %v492 = vrot.slane %v491, 2
        %v493 = vadd.f32 %v491, %v492
        %v494 = vrot.slane %v493, 1
        %v495 = vadd.f32 %v493, %v494
        %v496 = vmul.f32 %v488, %v427
        %v497 = vrot.slane %v496, 4
        %v498 = vadd.f32 %v496, %v497
        %v499 = vrot.slane %v498, 2
        %v500 = vadd.f32 %v498, %v499
        %v501 = vrot.slane %v500, 1
        %v502 = vadd.f32 %v500, %v501
        %v503 = vmul.f32 %v488, %v407
        %v504 = vrot.slane %v503, 4
        %v505 = vadd.f32 %v503, %v504
        %v506 = vrot.slane %v505, 2
        %v507 = vadd.f32 %v505, %v506
        %v508 = vrot.slane %v507, 1
        %v509 = vadd.f32 %v507, %v508
        %v510 = vmul.f32 %v488, %v421
        %v511 = vrot.slane %v510, 4
        %v512 = vadd.f32 %v510, %v511
        %v513 = vrot.slane %v512, 2
        %v514 = vadd.f32 %v512, %v513
        %v515 = vrot.slane %v514, 1
        %v516 = vadd.f32 %v514, %v515
        %517 = vset.pattern.permute.xlu0 4
        %518 = vperm.xlu0 %517, %v392
        %v519 = vpop.permute.xlu0 %518
        %v521 = vmul.f32 %v488, %v519
        %v522 = vrot.slane %v521, 4
        %v523 = vadd.f32 %v521, %v522
        %v524 = vrot.slane %v523, 2
        %v525 = vadd.f32 %v523, %v524
        %v526 = vrot.slane %v525, 1
        %v527 = vadd.f32 %v525, %v526
        %vm528 = vcmp.ge.f32.partialorder %v472, 0.5
        %vm529 = vcmp.lt.f32.partialorder %v472, 0.4
        %v530 = vsel %vm528, 1, 0
        %v531 = vcvt.s32.f32 %v530
        %v532 = vcvt.s32.f32 %v474
        %vm533 = vcmp.eq.f32.partialorder %v532, %v527
        %v534 = vsel %vm533, 1, 0
        %v535 = vcvt.s32.f32 %v534
        %v536 = vsel %vm529, 0.0, -1.0
        %vm537 = vcmp.eq.s32.totalorder %v530, 1
        %v538 = vsel %vm537, %v535, %v536
        %vm539 = vcmp.eq.f32.partialorder %v538, 1.0
        %v540 = vsel %vm539, 0.25, 0.75
        %v541 = vsub.f32 1.0, %v375
        %v542 = vsel %vm539, %v541, %v375
        %v543 = vmul.f32 %v542, %v542
        %v544 = vmul.f32 %v540, %v543
        %v545 = vsel %vm539, %v375, %v541
        %v546 = vlog2.pop %v545
        %v547 = vmul.f32 %v546, 0.6931472
        %v548 = vsub.f32 0.0, %v547
        %vm549 = vcmp.ne.f32.partialorder %v538, -1.0
        %v550 = vmul.f32 %v544, %v548
        %v551 = vsel %vm549, %v550, 0.0
        %v552 = vsub.f32 %v509, %v495
        %v553 = vsub.f32 %v516, %v502
        %v554 = vmul.f32 %v552, 0.5
        %v555 = vadd.f32 %v495, %v554
        %v556 = vmul.f32 %v553, 0.5
        %v557 = vadd.f32 %v502, %v556
        %v558 = vmax.f32 %v552, 1.0
        %v559 = vmax.f32 %v553, 1.0
        %v560 = vsub.f32 %v557, %v391
        %v561 = vperm.slane %v385, 2
        %v563 = vrcp.pop %v561
        %v564 = vmul.f32 %v561, %v563
        %v565 = vsub.f32 1.0, %v564
        %v566 = vmul.f32 %v563, %v565
        %v567 = vadd.f32 %v563, %v566
        %vm568 = vweird.f32 %v561
        %vm569 = vweird.f32 %v563
        %vm570 = vmor %vm568, %vm569
        %v571 = vsel %vm570, %v563, %v567
        %v572 = vand.u32 2147483647, %v561
        %vm573 = vcmp.eq.f32.partialorder %v572, 8.507059e+37
        %v574 = vand.u32 %v561, 2147483648
        %v575 = vor.u32 1.1754944e-38, %v574
        %v576 = vsel %vm573, %v575, %v571
        %v577 = vmul.f32 %v560, %v576
        %v578 = vrcp.pop 0.1
        %v579 = vmul.f32 0.1, %v578
        %v580 = vsub.f32 1.0, %v579
        %v581 = vmul.f32 %v578, %v580
        %v582 = vadd.f32 %v578, %v581
        %vm583 = vweird.f32 %v578
        %v584 = vsel %vm583, %v578, %v582
        %v585 = vmul.f32 %v577, %v584
        %v587 = vperm.slane %v391, 1
        %v589 = vsub.f32 %v555, %v587
        %v590 = vperm.slane %v385, 3
        %v592 = vrcp.pop %v590
        %v593 = vmul.f32 %v590, %v592
        %v594 = vsub.f32 1.0, %v593
        %v595 = vmul.f32 %v592, %v594
        %v596 = vadd.f32 %v592, %v595
        %vm597 = vweird.f32 %v590
        %vm598 = vweird.f32 %v592
        %vm599 = vmor %vm597, %vm598
        %v600 = vsel %vm599, %v592, %v596
        %v601 = vand.u32 2147483647, %v590
        %vm602 = vcmp.eq.f32.partialorder %v601, 8.507059e+37
        %v603 = vand.u32 %v590, 2147483648
        %v604 = vor.u32 1.1754944e-38, %v603
        %v605 = vsel %vm602, %v604, %v600
        %v606 = vmul.f32 %v589, %v605
        %v607 = vmul.f32 %v606, %v584
        %v608 = vmul.f32 %v559, %v576
        %v609 = vlog2.pop %v608
        %v610 = vmul.f32 %v609, 0.6931472
        %v611 = vrcp.pop 0.2
        %v612 = vmul.f32 0.2, %v611
        %v613 = vsub.f32 1.0, %v612
        %v614 = vmul.f32 %v611, %v613
        %v615 = vadd.f32 %v611, %v614
        %vm616 = vweird.f32 %v611
        %v617 = vsel %vm616, %v611, %v615
        %v618 = vmul.f32 %v610, %v617
        %v619 = vmul.f32 %v558, %v605
        %v620 = vlog2.pop %v619
        %v621 = vmul.f32 %v620, 0.6931472
        %v622 = vmul.f32 %v621, %v617
        %v623 = vsub.f32 %v585, %v353
        %v624 = vand.u32 2147483647, %v623
        %vm625 = vcmp.le.f32.partialorder %v624, 0.11111111
        %v626 = vmul.f32 %v624, 4.5
        %v627 = vmul.f32 %v626, %v624
        %v628 = vsub.f32 %v624, 0.055555556
        %v629 = vsel %vm625, %v627, %v628
        %v631 = vrot.slane %v353, 1
        %v633 = vsub.f32 %v607, %v631
        %v634 = vand.u32 2147483647, %v633
        %vm635 = vcmp.le.f32.partialorder %v634, 0.11111111
        %v636 = vmul.f32 %v634, 4.5
        %v637 = vmul.f32 %v636, %v634
        %v638 = vsub.f32 %v634, 0.055555556
        %v639 = vsel %vm635, %v637, %v638
        %v640 = vadd.f32 %v629, %v639
        %v641 = vrot.slane %v353, 2
        %v643 = vsub.f32 %v618, %v641
        %v644 = vand.u32 2147483647, %v643
        %vm645 = vcmp.le.f32.partialorder %v644, 0.11111111
        %v646 = vmul.f32 %v644, 4.5
        %v647 = vmul.f32 %v646, %v644
        %v648 = vsub.f32 %v644, 0.055555556
        %v649 = vsel %vm645, %v647, %v648
        %v650 = vadd.f32 %v640, %v649
        %v651 = vrot.slane %v353, 3
        %v653 = vsub.f32 %v622, %v651
        %v654 = vand.u32 2147483647, %v653
        %vm655 = vcmp.le.f32.partialorder %v654, 0.11111111
        %v656 = vmul.f32 %v654, 4.5
        %v657 = vmul.f32 %v656, %v654
        %v658 = vsub.f32 %v654, 0.055555556
        %v659 = vsel %vm655, %v657, %v658
        %v660 = vadd.f32 %v650, %v659
        %v661 = vmul.f32 %v531, %v660
        %v662 = vld [vmem:[#allocation2] sm:$0xff]
        %v663 = vadd.f32 %v662, %v551
        %664 = vst [vmem:[#allocation2] sm:$0xff] %v663
        %v665 = vld [vmem:[#allocation3] sm:$0x1]
        %v666 = vadd.f32 %v665, %v661
        %667 = vst [vmem:[#allocation3] sm:$0x1] %v666
        %v668 = vld [vmem:[#allocation4] sm:$0x1]
        %v669 = vadd.f32 %v668, %v531
        %670 = vst [vmem:[#allocation4] sm:$0x1] %v669
        %p671 = scmp.eq.s32.totalorder %s29, 1
        // Predicated region
        $region45: #{tpu_custom_call.1} parent=39 // pred_check
          %p672 = pneg %p671
        $region46: #{tpu_custom_call.1} parent=39 // pred_check_branch
          %674 = sbr.rel (%p672) target = $region48
        $region47: #{tpu_custom_call.1} parent=39 // pred_region
          %v675 = vld [vmem:[#allocation4] sm:$0x1]
          %vm676 = vcmask 1040384
          %v677 = vsel %vm676, %v675, 0.0
          %678 = vadd.xlane.f32.xlu0 %v677
          %v679 = vpop.xlane.xlu0 %678
          %v680 = vrot.slane %v679, 4
          %v681 = vadd.f32 %v679, %v680
          %v682 = vrot.slane %v681, 2
          %v683 = vadd.f32 %v681, %v682
          %v684 = vrot.slane %v683, 1
          %v685 = vadd.f32 %v683, %v684
          %s686 = vtos %v685
          %v687 = vstv %s686
          %v688 = vld [vmem:[#allocation2] sm:$0xff]
          %689 = vadd.xlane.f32.xlu0 %v688
          %v690 = vpop.xlane.xlu0 %689
          %v691 = vrot.slane %v690, 4
          %v692 = vadd.f32 %v690, %v691
          %v693 = vrot.slane %v692, 2
          %v694 = vadd.f32 %v692, %v693
          %v695 = vrot.slane %v694, 1
          %v696 = vadd.f32 %v694, %v695
          %s697 = vtos %v696
          %v698 = vstv %s697
          %v699 = vld [vmem:[#allocation3] sm:$0x1]
          %v700 = vsel %vm676, %v699, 0.0
          %701 = vadd.xlane.f32.xlu0 %v700
          %v702 = vpop.xlane.xlu0 %701
          %v703 = vrot.slane %v702, 4
          %v704 = vadd.f32 %v702, %v703
          %v705 = vrot.slane %v704, 2
          %v706 = vadd.f32 %v704, %v705
          %v707 = vrot.slane %v706, 1
          %v708 = vadd.f32 %v706, %v707
          %s709 = vtos %v708
          %v710 = vstv %s709
          %v711 = vmax.f32 %v687, 1.0
          %v712 = vrcp.pop %v711
          %v713 = vmul.f32 %v711, %v712
          %v714 = vsub.f32 1.0, %v713
          %v715 = vmul.f32 %v712, %v714
          %v716 = vadd.f32 %v712, %v715
          %vm717 = vweird.f32 %v711
          %vm718 = vweird.f32 %v712
          %vm719 = vmor %vm717, %vm718
          %v720 = vsel %vm719, %v712, %v716
          %v721 = vand.u32 2147483647, %v711
          %vm722 = vcmp.eq.f32.partialorder %v721, 8.507059e+37
          %v723 = vand.u32 %v711, 2147483648
          %v724 = vor.u32 1.1754944e-38, %v723
          %v725 = vsel %vm722, %v724, %v720
          %v726 = vmul.f32 %v698, %v725
          %v727 = vmul.f32 %v687, 4.0
          %v728 = vmax.f32 %v727, 1.0
          %v729 = vrcp.pop %v728
          %v730 = vmul.f32 %v728, %v729
          %v731 = vsub.f32 1.0, %v730
          %v732 = vmul.f32 %v729, %v731
          %v733 = vadd.f32 %v729, %v732
          %vm734 = vweird.f32 %v728
          %vm735 = vweird.f32 %v729
          %vm736 = vmor %vm734, %vm735
          %v737 = vsel %vm736, %v729, %v733
          %v738 = vand.u32 2147483647, %v728
          %vm739 = vcmp.eq.f32.partialorder %v738, 8.507059e+37
          %v740 = vand.u32 %v728, 2147483648
          %v741 = vor.u32 1.1754944e-38, %v740
          %v742 = vsel %vm739, %v741, %v737
          %v743 = vmul.f32 %v710, %v742
          %744 = vst [vmem:[%s280] sm:$0x1] %v726
          %745 = vst [vmem:[%s286] sm:$0x1] %v743
        $region48: #{tpu_custom_call.1} parent=39 // pred_fallthru
          _
        %s746 = sand.u32 %s161, 1
        %s747 = scalar_lea.sflag [#allocation6], %s746
        %s748 = sand.u32 %s161, 1
        %s749 = scalar_lea.vmem [#allocation5], %s748
        %s750 = sand.u32 %s187, 1
        %s751 = scalar_lea.sflag [#allocation8], %s750
        %s752 = sand.u32 %s187, 1
        %s753 = scalar_lea.vmem [#allocation7], %s752
        // Predicated region
        $region49: #{tpu_custom_call.1} parent=39 // pred_check
          %p754 = pneg %p171
        $region50: #{tpu_custom_call.1} parent=39 // pred_check_branch
          %756 = sbr.rel (%p754) target = $region52
        $region51: #{tpu_custom_call.1} parent=39 // pred_region
          %758 = vsyncadd %s747, 0
          %s759 = scalar_lea.hbm %s5, %s28
          %s761 = sshll.u32 %s749, 4
          %s762 = int_to_ptr.vmem [resolvable:$true] %s761
          %s763 = sshll.u32 %s759, 4
          %s764 = int_to_ptr.hbm [resolvable:$true] %s763
          %766 = dma.vmem_to_hbm [thread:$0]  %s762, 16, %s764, %s747
        $region52: #{tpu_custom_call.1} parent=39 // pred_fallthru
          _
        // Predicated region
        $region53: #{tpu_custom_call.1} parent=39 // pred_check
          %p767 = pneg %p197
        $region54: #{tpu_custom_call.1} parent=39 // pred_check_branch
          %769 = sbr.rel (%p767) target = $region56
        $region55: #{tpu_custom_call.1} parent=39 // pred_region
          %771 = vsyncadd %s751, 0
          %s772 = scalar_lea.hbm %s6, %s28
          %s774 = sshll.u32 %s753, 4
          %s775 = int_to_ptr.vmem [resolvable:$true] %s774
          %s776 = sshll.u32 %s772, 4
          %s777 = int_to_ptr.hbm [resolvable:$true] %s776
          %779 = dma.vmem_to_hbm [thread:$0]  %s775, 16, %s777, %s751
        $region56: #{tpu_custom_call.1} parent=39 // pred_fallthru
          _
      $region40: #{tpu_custom_call.1} parent=5 // pred_fallthru
        _
      %p780 = scmp.le.s32.totalorder 2, %s19
      // Predicated region
      $region57: #{tpu_custom_call.1} parent=5 // pred_check
        %p781 = pneg %p780
      $region58: #{tpu_custom_call.1} parent=5 // pred_check_branch
        %783 = sbr.rel (%p781) target = $region60
      $region59: #{tpu_custom_call.1} parent=5 // pred_region
        %s784 = ssub.s32 %s19, 2
        // Predicated region
        $region61: #{tpu_custom_call.1} parent=59 // pred_check
          %p785 = pneg %p177
        $region62: #{tpu_custom_call.1} parent=59 // pred_check_branch
          %787 = sbr.rel (%p785) target = $region64
        $region63: #{tpu_custom_call.1} parent=59 // pred_region
          %s788 = sand.u32 %s162, 1
          %s789 = scalar_lea.sflag [#allocation6], %s788
          %s790 = sand.u32 %s162, 1
          %s791 = scalar_lea.vmem [#allocation5], %s790
          %793 = dma.done %s789, 16
        $region64: #{tpu_custom_call.1} parent=59 // pred_fallthru
          _
        // Predicated region
        $region65: #{tpu_custom_call.1} parent=59 // pred_check
          %p794 = pneg %p203
        $region66: #{tpu_custom_call.1} parent=59 // pred_check_branch
          %796 = sbr.rel (%p794) target = $region68
        $region67: #{tpu_custom_call.1} parent=59 // pred_region
          %s797 = sand.u32 %s188, 1
          %s798 = scalar_lea.sflag [#allocation8], %s797
          %s799 = sand.u32 %s188, 1
          %s800 = scalar_lea.vmem [#allocation7], %s799
          %802 = dma.done %s798, 16
        $region68: #{tpu_custom_call.1} parent=59 // pred_fallthru
          _
      $region60: #{tpu_custom_call.1} parent=5 // pred_fallthru
        _
    $region6: #{tpu_custom_call.1} parent=1 // loop_footer
      %s23 = sadd.s32 1, %s19
    $region7: #{tpu_custom_call.1} parent=1 // loop_footer_branch
      %18 = sbr.rel target = $region3
    $region8: #{tpu_custom_call.1} parent=1 // loop_exit
      _
    %803 = vsyncpa [#allocation6], 1
    %s804 = scalar_lea.sflag [#allocation6], 1
    %805 = vsyncpa %s804, 1
    %806 = vsyncpa [#allocation8], 1
    %s807 = scalar_lea.sflag [#allocation8], 1
    %808 = vsyncpa %s807, 1

</llo_original>
